<compile_context>
chip_gen: v7x
topology: tpu7x:2x2x1
jax: 0.10.0
libtpu: 0.0.40
codegen_flags: <defaults>
</compile_context>

<pallas_src>
import jax
import jax.numpy as jnp
from jax.experimental import pallas as pl
from jax.experimental.pallas import tpu as pltpu


def _round_up(x: int, m: int) -> int:
    return -(-x // m) * m


def make_decoder_kernel(n_layers: int, hidden_size: int):
    H = hidden_size

    def kernel(*refs):
        idx = 0
        emb_ref = refs[idx]; idx += 1          # (TB, E)           bf16
        hid_ref = refs[idx]; idx += 1          # (nl, TB, H)       f32
        enc_ref = refs[idx]; idx += 1          # (TB, L, H)        bf16
        bias_ref = refs[idx]; idx += 1         # (TB, L)           f32 additive mask
        layer_refs = []
        for _ in range(n_layers):              # Wi (in,Gp) Wh (H,Gp) bi bh (1,Gp)
            layer_refs.append(refs[idx:idx + 4]); idx += 4
        wc_rnn_ref, wc_ctx_ref, bc_ref, wo_ref, bo_ref = refs[idx:idx + 5]; idx += 5
        out_ref, hid_out_ref = refs[idx], refs[idx + 1]; idx += 2
        cc_ref = refs[idx]                     # VMEM scratch (TB, H) bf16

        f32, bf16 = jnp.float32, jnp.bfloat16
        j = pl.program_id(1)                   # vocab-tile axis (inner, arbitrary)

        # --- GRU step + attention + concat/tanh: once per batch tile --------
        @pl.when(j == 0)
        def _compute_state():
            x_b = emb_ref[...]                                   # (TB, E) bf16
            h_last = None
            for l, (wi, wh, bi, bh) in enumerate(layer_refs):
                h = hid_ref[l]                                   # (TB, H) f32
                # Fused 3-gate matmuls (2 MXU pushes instead of 6 tiny ones).
                gi = jnp.dot(x_b, wi[...], preferred_element_type=f32) + bi[...]
                gh = (jnp.dot(h.astype(bf16), wh[...],
                              preferred_element_type=f32) + bh[...])
                r = jax.nn.sigmoid(gi[:, :H] + gh[:, :H])
                z = jax.nn.sigmoid(gi[:, H:2 * H] + gh[:, H:2 * H])
                n = jnp.tanh(gi[:, 2 * H:3 * H] + r * gh[:, 2 * H:3 * H])
                h_new = (1.0 - z) * n + z * h                    # f32 (TB, H)
                hid_out_ref[l] = h_new
                x_b = h_new.astype(bf16)                         # feed next layer
                h_last = h_new

            # Dot-product attention (batched MXU einsums, f32 softmax).  At
            # production L*H the MXU path fills; at tiny shapes a VPU/XLU
            # mul+reduce variant could be benchmarked instead.
            enc_b = enc_ref[...]                                 # (TB, L, H) bf16
            scores = jnp.einsum('bqh,blh->bql', x_b[:, None, :], enc_b,
                                preferred_element_type=f32)[:, 0, :]
            scores = scores + bias_ref[...]                      # additive mask
            scores = scores - jnp.max(scores, axis=1, keepdims=True)
            e = jnp.exp(scores)                                  # (TB, L) f32
            inv = pl.reciprocal(jnp.sum(e, axis=1, keepdims=True), approx=True)
            ctx = jnp.einsum('bql,blh->bqh', e.astype(bf16)[:, None, :], enc_b,
                             preferred_element_type=f32)[:, 0, :] * inv

            # concat -> Linear -> tanh (weights pre-split / pre-transposed)
            cc = jnp.tanh(
                jnp.dot(x_b, wc_rnn_ref[...], preferred_element_type=f32)
                + jnp.dot(ctx.astype(bf16), wc_ctx_ref[...],
                          preferred_element_type=f32)
                + bc_ref[...])
            cc_ref[...] = cc.astype(bf16)

        # --- output projection, streamed over lane-dense vocab tiles --------
        out = (jnp.dot(cc_ref[...], wo_ref[...], preferred_element_type=f32)
               + bo_ref[...])
        out_ref[...] = out.astype(out_ref.dtype)

    return kernel


def prepare_decoder(params, encoder_outputs, mask, *, n_layers, hidden_size,
                    output_size):
    """Once-per-sequence / once-per-model preprocessing (hoisted out of the
    per-token decode step): weight packing, transposes, bf16 casts, vocab
    padding, encoder transpose, mask -> additive bias."""
    H = hidden_size
    L, B, _ = encoder_outputs.shape
    V = output_size
    E = params["embedding"].shape[1]
    B_pad = _round_up(B, 8)
    V_pad = _round_up(V, 128)
    G = 3 * H
    G_pad = _round_up(G, 128)
    bf16, f32 = jnp.bfloat16, jnp.float32

    def pad_b(x, axis):
        pad = [(0, 0)] * x.ndim
        pad[axis] = (0, B_pad - B)
        return jnp.pad(x, pad)

    weights = []
    for l in range(n_layers):
        w_ih = params[f"w_ih_{l}"]                      # (3H, in) order r|z|n
        w_hh = params[f"w_hh_{l}"]                      # (3H, H)
        weights += [
            jnp.pad(w_ih.T, ((0, 0), (0, G_pad - G))).astype(bf16),   # (in, Gp)
            jnp.pad(w_hh.T, ((0, 0), (0, G_pad - G))).astype(bf16),   # (H, Gp)
            jnp.pad(params[f"b_ih_{l}"], (0, G_pad - G)).reshape(1, G_pad).astype(f32),
            jnp.pad(params[f"b_hh_{l}"], (0, G_pad - G)).reshape(1, G_pad).astype(f32),
        ]
    wc = params["w_concat"]                             # (H, 2H)
    weights += [
        wc[:, :H].T.astype(bf16),                       # (H, H) acts on rnn_out
        wc[:, H:].T.astype(bf16),                       # (H, H) acts on context
        params["b_concat"].reshape(1, H).astype(f32),
        jnp.pad(params["w_out"], ((0, V_pad - V), (0, 0))).T.astype(bf16),  # (H, Vp)
        jnp.pad(params["b_out"], (0, V_pad - V)).reshape(1, V_pad).astype(f32),
    ]

    return dict(
        embedding=params["embedding"].astype(bf16),                     # (V, E)
        weights=weights,
        enc=pad_b(jnp.transpose(encoder_outputs, (1, 0, 2)).astype(bf16), 0),
        bias=pad_b(jnp.where(mask == 0, f32(-1e10), f32(0.0)), 0),
        dims=dict(B=B, B_pad=B_pad, L=L, E=E, H=H, V=V, V_pad=V_pad,
                  G_pad=G_pad, n_layers=n_layers),
    )


def decoder_step(current_token, hidden_state, prep, *, batch_tile=None,
                 vocab_tile=None):
    """One autoregressive decode step using the prepared (packed) parameters."""
    d = prep["dims"]
    B, B_pad, L, E, H, V, V_pad, n_layers = (d["B"], d["B_pad"], d["L"], d["E"],
                                             d["H"], d["V"], d["V_pad"],
                                             d["n_layers"])
    f32 = jnp.float32

    # Batch tile: as large as possible (fills MXU rows, amortizes per-step
    # overhead) but keep >= 2 grid steps when the batch allows it so the two
    # v7x TensorCores both get work.
    if batch_tile is None:
        cap = min(128, B_pad if B_pad < 16 else B_pad // 2)
        batch_tile = 8
        t = 8
        while t <= cap:
            if B_pad % t == 0:
                batch_tile = t
            t += 8
    TB = batch_tile
    TV = vocab_tile if vocab_tile is not None else min(V_pad, 512)

    # Per-token glue: embedding row gather (data-dependent -> plain JAX) and
    # batch padding of the recurrent state.
    emb_p = jnp.pad(jnp.take(prep["embedding"], current_token[0], axis=0),
                    ((0, B_pad - B), (0, 0)))                            # (Bp, E)
    hid_p = jnp.pad(hidden_state.astype(f32),
                    ((0, 0), (0, B_pad - B), (0, 0)))                    # (nl,Bp,H)

    inputs = [emb_p, hid_p, prep["enc"], prep["bias"]] + list(prep["weights"])

    def const_spec(shape):
        nd = len(shape)
        return pl.BlockSpec(tuple(shape), lambda b, j, _nd=nd: (0,) * _nd)

    n_const = 4 * n_layers + 3        # per-layer packed weights + concat params
    in_specs = [
        pl.BlockSpec((TB, E), lambda b, j: (b, 0)),
        pl.BlockSpec((n_layers, TB, H), lambda b, j: (0, b, 0)),
        pl.BlockSpec((TB, L, H), lambda b, j: (b, 0, 0)),
        pl.BlockSpec((TB, L), lambda b, j: (b, 0)),
    ]
    in_specs += [const_spec(x.shape) for x in inputs[4:4 + n_const]]
    in_specs += [
        pl.BlockSpec((H, TV), lambda b, j: (0, j)),      # w_out, vocab-streamed
        pl.BlockSpec((1, TV), lambda b, j: (0, j)),      # b_out
    ]

    out_specs = (pl.BlockSpec((TB, TV), lambda b, j: (b, j)),
                 pl.BlockSpec((n_layers, TB, H), lambda b, j: (0, b, 0)))
    out_shape = (jax.ShapeDtypeStruct((B_pad, V_pad), f32),
                 jax.ShapeDtypeStruct((n_layers, B_pad, H), f32))

    kernel = make_decoder_kernel(n_layers, H)
    out_pad, hid_pad = pl.pallas_call(
        kernel,
        out_shape=out_shape,
        grid_spec=pltpu.PrefetchScalarGridSpec(
            num_scalar_prefetch=0,
            grid=(B_pad // TB, V_pad // TV),
            in_specs=in_specs,
            out_specs=out_specs,
            scratch_shapes=[pltpu.VMEM((TB, H), jnp.bfloat16)]),
        # Reuse the padded hidden-state HBM buffer for the new hidden state.
        input_output_aliases={1: 1},
        compiler_params=pltpu.CompilerParams(
            dimension_semantics=("parallel", "arbitrary"),
            # 32 MiB: below v7x's 64 MiB physical VMEM, >= default scoped
            # limits on v5e/v6e; plenty for these block sizes.
            vmem_limit_bytes=32 * 1024 * 1024),
    )(*inputs)
    return out_pad[:B, :V], hid_pad[:, :B, :]


def reference_forward(current_token, hidden_state, encoder_outputs, mask, params,
                      *, n_layers, hidden_size):
    """Pure-jnp f32 reference mirroring the PyTorch forward."""
    H = hidden_size
    x = jnp.take(params["embedding"], current_token[0], axis=0)
    new_hidden = []
    for l in range(n_layers):
        h = hidden_state[l]
        gi = x @ params[f"w_ih_{l}"].T + params[f"b_ih_{l}"]
        gh = h @ params[f"w_hh_{l}"].T + params[f"b_hh_{l}"]
        r = jax.nn.sigmoid(gi[:, :H] + gh[:, :H])
        z = jax.nn.sigmoid(gi[:, H:2 * H] + gh[:, H:2 * H])
        n = jnp.tanh(gi[:, 2 * H:] + r * gh[:, 2 * H:])
        h_new = (1.0 - z) * n + z * h
        new_hidden.append(h_new)
        x = h_new
    rnn_out = x
    scores = jnp.sum(rnn_out[None] * encoder_outputs, axis=2).T
    scores = jnp.where(mask == 0, -1e10, scores)
    attn = jax.nn.softmax(scores, axis=1)
    ctx = jnp.einsum("bl,lbh->bh", attn, encoder_outputs)
    cc = jnp.tanh(jnp.concatenate([rnn_out, ctx], axis=1)
                  @ params["w_concat"].T + params["b_concat"])
    out = cc @ params["w_out"].T + params["b_out"]
    return out, jnp.stack(new_hidden, axis=0)


if __name__ == "__main__":
    # small shapes consistent with the module
    B = 4            # batch
    L = 8            # encoder max_len (seq)
    E = 32           # embedding_size
    H = 32           # hidden_size
    V = 40           # output_size (vocab)
    n_layers = 2

    key = jax.random.PRNGKey(0)
    keys = iter(jax.random.split(key, 32))
    scale = 1.0 / jnp.sqrt(H)

    params = {"embedding": jax.random.normal(next(keys), (V, E), jnp.float32) * 0.1}
    for l in range(n_layers):
        in_sz = E if l == 0 else H
        params[f"w_ih_{l}"] = jax.random.uniform(next(keys), (3 * H, in_sz),
                                                 minval=-scale, maxval=scale)
        params[f"w_hh_{l}"] = jax.random.uniform(next(keys), (3 * H, H),
                                                 minval=-scale, maxval=scale)
        params[f"b_ih_{l}"] = jax.random.uniform(next(keys), (3 * H,),
                                                 minval=-scale, maxval=scale)
        params[f"b_hh_{l}"] = jax.random.uniform(next(keys), (3 * H,),
                                                 minval=-scale, maxval=scale)
    params["w_concat"] = jax.random.uniform(next(keys), (H, 2 * H),
                                            minval=-scale, maxval=scale)
    params["b_concat"] = jax.random.uniform(next(keys), (H,),
                                            minval=-scale, maxval=scale)
    params["w_out"] = jax.random.uniform(next(keys), (V, H),
                                         minval=-scale, maxval=scale)
    params["b_out"] = jax.random.uniform(next(keys), (V,),
                                         minval=-scale, maxval=scale)

    current_token = jax.random.randint(next(keys), (1, B), 0, V, dtype=jnp.int32)
    hidden_state = jax.random.normal(next(keys), (n_layers, B, H), jnp.float32)
    encoder_outputs = jax.random.normal(next(keys), (L, B, H), jnp.float32)
    # mask (B, L): 1 = valid, 0 = padded
    lengths = jnp.array([L, L - 2, L - 3, 5], dtype=jnp.int32)
    mask = (jnp.arange(L)[None, :] < lengths[:, None]).astype(jnp.int32)

    # One-time preprocessing (per sequence), then a per-token decode step.
    prep = prepare_decoder(params, encoder_outputs, mask,
                           n_layers=n_layers, hidden_size=H, output_size=V)
    out, new_hidden = jax.block_until_ready(
        decoder_step(current_token, hidden_state, prep))

    ref_out, ref_hidden = reference_forward(
        current_token, hidden_state, encoder_outputs, mask, params,
        n_layers=n_layers, hidden_size=H)

    assert out.shape == (B, V) and new_hidden.shape == (n_layers, B, H)
    # bf16 matmul operands (f32 accumulation) + approx reciprocal -> loosened tol.
    assert jnp.allclose(out, ref_out, atol=3e-2, rtol=3e-2)
    assert jnp.allclose(new_hidden, ref_hidden, atol=3e-2, rtol=3e-2)
    print("KERNEL_OK")
</pallas_src>

<mosaic_0001>
module attributes {stable_mosaic.version = 11 : i64} {
  func.func @kernel(%arg0: i32, %arg1: i32, %arg2: memref<8x32xbf16, #tpu.memory_space<vmem>>, %arg3: memref<2x8x32xf32, #tpu.memory_space<vmem>>, %arg4: memref<8x8x32xbf16, #tpu.memory_space<vmem>>, %arg5: memref<8x8xf32, #tpu.memory_space<vmem>>, %arg6: memref<32x128xbf16, #tpu.memory_space<vmem>>, %arg7: memref<32x128xbf16, #tpu.memory_space<vmem>>, %arg8: memref<1x128xf32, #tpu.memory_space<vmem>>, %arg9: memref<1x128xf32, #tpu.memory_space<vmem>>, %arg10: memref<32x128xbf16, #tpu.memory_space<vmem>>, %arg11: memref<32x128xbf16, #tpu.memory_space<vmem>>, %arg12: memref<1x128xf32, #tpu.memory_space<vmem>>, %arg13: memref<1x128xf32, #tpu.memory_space<vmem>>, %arg14: memref<32x32xbf16, #tpu.memory_space<vmem>>, %arg15: memref<32x32xbf16, #tpu.memory_space<vmem>>, %arg16: memref<1x32xf32, #tpu.memory_space<vmem>>, %arg17: memref<32x128xbf16, #tpu.memory_space<vmem>>, %arg18: memref<1x128xf32, #tpu.memory_space<vmem>>, %arg19: memref<8x128xf32, #tpu.memory_space<vmem>>, %arg20: memref<2x8x32xf32, #tpu.memory_space<vmem>>, %arg21: memref<8x32xbf16, #tpu.memory_space<vmem>>) attributes {dimension_semantics = [#tpu.dimension_semantics<parallel>, #tpu.dimension_semantics<arbitrary>], iteration_bounds = array<i64: 1, 1>, scalar_prefetch = 0 : i64, scratch_operands = 1 : i64, tpu.core_type = #tpu.core_type<tc>, window_params = [{transform_indices = @transform_0, window_bounds = array<i64: 8, 32>}, {transform_indices = @transform_1, window_bounds = array<i64: 2, 8, 32>}, {transform_indices = @transform_2, window_bounds = array<i64: 8, 8, 32>}, {transform_indices = @transform_3, window_bounds = array<i64: 8, 8>}, {pipeline_mode = #tpu.pipeline_mode<synchronous>, transform_indices = @transform_4, window_bounds = array<i64: 32, 128>}, {pipeline_mode = #tpu.pipeline_mode<synchronous>, transform_indices = @transform_5, window_bounds = array<i64: 32, 128>}, {pipeline_mode = #tpu.pipeline_mode<synchronous>, transform_indices = @transform_6, window_bounds = array<i64: 1, 128>}, {pipeline_mode = #tpu.pipeline_mode<synchronous>, transform_indices = @transform_7, window_bounds = array<i64: 1, 128>}, {pipeline_mode = #tpu.pipeline_mode<synchronous>, transform_indices = @transform_8, window_bounds = array<i64: 32, 128>}, {pipeline_mode = #tpu.pipeline_mode<synchronous>, transform_indices = @transform_9, window_bounds = array<i64: 32, 128>}, {pipeline_mode = #tpu.pipeline_mode<synchronous>, transform_indices = @transform_10, window_bounds = array<i64: 1, 128>}, {pipeline_mode = #tpu.pipeline_mode<synchronous>, transform_indices = @transform_11, window_bounds = array<i64: 1, 128>}, {pipeline_mode = #tpu.pipeline_mode<synchronous>, transform_indices = @transform_12, window_bounds = array<i64: 32, 32>}, {pipeline_mode = #tpu.pipeline_mode<synchronous>, transform_indices = @transform_13, window_bounds = array<i64: 32, 32>}, {pipeline_mode = #tpu.pipeline_mode<synchronous>, transform_indices = @transform_14, window_bounds = array<i64: 1, 32>}, {transform_indices = @transform_15, window_bounds = array<i64: 32, 128>}, {transform_indices = @transform_16, window_bounds = array<i64: 1, 128>}, {transform_indices = @transform_17, window_bounds = array<i64: 8, 128>}, {transform_indices = @transform_18, window_bounds = array<i64: 2, 8, 32>}]} {
    %c0_i32 = arith.constant 0 : i32
    %0 = arith.cmpi eq, %arg1, %c0_i32 : i32
    %1 = arith.extui %0 : i1 to i32
    %c0_i32_0 = arith.constant 0 : i32
    %2 = arith.cmpi ne, %1, %c0_i32_0 : i32
    scf.if %2 {
      %c0_8 = arith.constant 0 : index
      %c0_9 = arith.constant 0 : index
      %10 = vector.load %arg2[%c0_8, %c0_9] : memref<8x32xbf16, #tpu.memory_space<vmem>>, vector<8x32xbf16>
      %c0_10 = arith.constant 0 : index
      %c0_11 = arith.constant 0 : index
      %c0_12 = arith.constant 0 : index
      %11 = vector.load %arg3[%c0_10, %c0_11, %c0_12] : memref<2x8x32xf32, #tpu.memory_space<vmem>>, vector<1x8x32xf32>
      %12 = vector.shape_cast %11 : vector<1x8x32xf32> to vector<8x32xf32>
      %c0_13 = arith.constant 0 : index
      %c0_14 = arith.constant 0 : index
      %13 = vector.load %arg6[%c0_13, %c0_14] : memref<32x128xbf16, #tpu.memory_space<vmem>>, vector<32x128xbf16>
      %cst_15 = arith.constant dense<0.000000e+00> : vector<8x128xf32>
      %14 = tpu.matmul %10, %13, %cst_15 {dimension_numbers = #tpu.dot_dimension_numbers<[1], [0], [0], [1], [0, 0, 1, 1], [], []>} : vector<8x32xbf16>, vector<32x128xbf16>, vector<8x128xf32> -> vector<8x128xf32>
      %c0_16 = arith.constant 0 : index
      %c0_17 = arith.constant 0 : index
      %15 = vector.load %arg8[%c0_16, %c0_17] : memref<1x128xf32, #tpu.memory_space<vmem>>, vector<1x128xf32>
      %16 = vector.broadcast %15 : vector<1x128xf32> to vector<8x128xf32>
      %17 = arith.addf %14, %16 : vector<8x128xf32>
      %18 = arith.truncf %12 : vector<8x32xf32> to vector<8x32xbf16>
      %c0_18 = arith.constant 0 : index
      %c0_19 = arith.constant 0 : index
      %19 = vector.load %arg7[%c0_18, %c0_19] : memref<32x128xbf16, #tpu.memory_space<vmem>>, vector<32x128xbf16>
      %cst_20 = arith.constant dense<0.000000e+00> : vector<8x128xf32>
      %20 = tpu.matmul %18, %19, %cst_20 {dimension_numbers = #tpu.dot_dimension_numbers<[1], [0], [0], [1], [0, 0, 1, 1], [], []>} : vector<8x32xbf16>, vector<32x128xbf16>, vector<8x128xf32> -> vector<8x128xf32>
      %c0_21 = arith.constant 0 : index
      %c0_22 = arith.constant 0 : index
      %21 = vector.load %arg9[%c0_21, %c0_22] : memref<1x128xf32, #tpu.memory_space<vmem>>, vector<1x128xf32>
      %22 = vector.broadcast %21 : vector<1x128xf32> to vector<8x128xf32>
      %23 = arith.addf %20, %22 : vector<8x128xf32>
      %24 = vector.extract_strided_slice %17 {offsets = [0, 0], sizes = [8, 32], strides = [1, 1]} : vector<8x128xf32> to vector<8x32xf32>
      %25 = vector.extract_strided_slice %23 {offsets = [0, 0], sizes = [8, 32], strides = [1, 1]} : vector<8x128xf32> to vector<8x32xf32>
      %26 = arith.addf %24, %25 : vector<8x32xf32>
      %27 = arith.negf %26 : vector<8x32xf32>
      %28 = math.exp %27 : vector<8x32xf32>
      %cst_23 = arith.constant 1.000000e+00 : f32
      %29 = vector.broadcast %cst_23 : f32 to vector<8x32xf32>
      %30 = arith.addf %29, %28 : vector<8x32xf32>
      %31 = arith.divf %29, %30 : vector<8x32xf32>
      %32 = vector.extract_strided_slice %17 {offsets = [0, 32], sizes = [8, 32], strides = [1, 1]} : vector<8x128xf32> to vector<8x32xf32>
      %33 = vector.extract_strided_slice %23 {offsets = [0, 32], sizes = [8, 32], strides = [1, 1]} : vector<8x128xf32> to vector<8x32xf32>
      %34 = arith.addf %32, %33 : vector<8x32xf32>
      %35 = arith.negf %34 : vector<8x32xf32>
      %36 = math.exp %35 : vector<8x32xf32>
      %cst_24 = arith.constant 1.000000e+00 : f32
      %37 = vector.broadcast %cst_24 : f32 to vector<8x32xf32>
      %38 = arith.addf %37, %36 : vector<8x32xf32>
      %39 = arith.divf %37, %38 : vector<8x32xf32>
      %40 = vector.extract_strided_slice %17 {offsets = [0, 64], sizes = [8, 32], strides = [1, 1]} : vector<8x128xf32> to vector<8x32xf32>
      %41 = vector.extract_strided_slice %23 {offsets = [0, 64], sizes = [8, 32], strides = [1, 1]} : vector<8x128xf32> to vector<8x32xf32>
      %42 = arith.mulf %31, %41 : vector<8x32xf32>
      %43 = arith.addf %40, %42 : vector<8x32xf32>
      %44 = math.tanh %43 : vector<8x32xf32>
      %cst_25 = arith.constant 1.000000e+00 : f32
      %45 = vector.broadcast %cst_25 : f32 to vector<8x32xf32>
      %46 = arith.subf %45, %39 : vector<8x32xf32>
      %47 = arith.mulf %46, %44 : vector<8x32xf32>
      %48 = arith.mulf %39, %12 : vector<8x32xf32>
      %49 = arith.addf %47, %48 : vector<8x32xf32>
      %c0_26 = arith.constant 0 : index
      %c0_27 = arith.constant 0 : index
      %c0_28 = arith.constant 0 : index
      %50 = vector.load %arg20[%c0_26, %c0_27, %c0_28] : memref<2x8x32xf32, #tpu.memory_space<vmem>>, vector<1x8x32xf32>
      %51 = vector.shape_cast %50 : vector<1x8x32xf32> to vector<8x32xf32>
      %52 = vector.shape_cast %49 : vector<8x32xf32> to vector<1x8x32xf32>
      tpu.vector_store %arg20[%c0_26, %c0_27, %c0_28], %52 {strides = array<i32>} : memref<2x8x32xf32, #tpu.memory_space<vmem>>, vector<1x8x32xf32>,
      %53 = arith.truncf %49 : vector<8x32xf32> to vector<8x32xbf16>
      %c1 = arith.constant 1 : index
      %c0_29 = arith.constant 0 : index
      %c0_30 = arith.constant 0 : index
      %54 = vector.load %arg3[%c1, %c0_29, %c0_30] : memref<2x8x32xf32, #tpu.memory_space<vmem>>, vector<1x8x32xf32>
      %55 = vector.shape_cast %54 : vector<1x8x32xf32> to vector<8x32xf32>
      %c0_31 = arith.constant 0 : index
      %c0_32 = arith.constant 0 : index
      %56 = vector.load %arg10[%c0_31, %c0_32] : memref<32x128xbf16, #tpu.memory_space<vmem>>, vector<32x128xbf16>
      %cst_33 = arith.constant dense<0.000000e+00> : vector<8x128xf32>
      %57 = tpu.matmul %53, %56, %cst_33 {dimension_numbers = #tpu.dot_dimension_numbers<[1], [0], [0], [1], [0, 0, 1, 1], [], []>} : vector<8x32xbf16>, vector<32x128xbf16>, vector<8x128xf32> -> vector<8x128xf32>
      %c0_34 = arith.constant 0 : index
      %c0_35 = arith.constant 0 : index
      %58 = vector.load %arg12[%c0_34, %c0_35] : memref<1x128xf32, #tpu.memory_space<vmem>>, vector<1x128xf32>
      %59 = vector.broadcast %58 : vector<1x128xf32> to vector<8x128xf32>
      %60 = arith.addf %57, %59 : vector<8x128xf32>
      %61 = arith.truncf %55 : vector<8x32xf32> to vector<8x32xbf16>
      %c0_36 = arith.constant 0 : index
      %c0_37 = arith.constant 0 : index
      %62 = vector.load %arg11[%c0_36, %c0_37] : memref<32x128xbf16, #tpu.memory_space<vmem>>, vector<32x128xbf16>
      %cst_38 = arith.constant dense<0.000000e+00> : vector<8x128xf32>
      %63 = tpu.matmul %61, %62, %cst_38 {dimension_numbers = #tpu.dot_dimension_numbers<[1], [0], [0], [1], [0, 0, 1, 1], [], []>} : vector<8x32xbf16>, vector<32x128xbf16>, vector<8x128xf32> -> vector<8x128xf32>
      %c0_39 = arith.constant 0 : index
      %c0_40 = arith.constant 0 : index
      %64 = vector.load %arg13[%c0_39, %c0_40] : memref<1x128xf32, #tpu.memory_space<vmem>>, vector<1x128xf32>
      %65 = vector.broadcast %64 : vector<1x128xf32> to vector<8x128xf32>
      %66 = arith.addf %63, %65 : vector<8x128xf32>
      %67 = vector.extract_strided_slice %60 {offsets = [0, 0], sizes = [8, 32], strides = [1, 1]} : vector<8x128xf32> to vector<8x32xf32>
      %68 = vector.extract_strided_slice %66 {offsets = [0, 0], sizes = [8, 32], strides = [1, 1]} : vector<8x128xf32> to vector<8x32xf32>
      %69 = arith.addf %67, %68 : vector<8x32xf32>
      %70 = arith.negf %69 : vector<8x32xf32>
      %71 = math.exp %70 : vector<8x32xf32>
      %cst_41 = arith.constant 1.000000e+00 : f32
      %72 = vector.broadcast %cst_41 : f32 to vector<8x32xf32>
      %73 = arith.addf %72, %71 : vector<8x32xf32>
      %74 = arith.divf %72, %73 : vector<8x32xf32>
      %75 = vector.extract_strided_slice %60 {offsets = [0, 32], sizes = [8, 32], strides = [1, 1]} : vector<8x128xf32> to vector<8x32xf32>
      %76 = vector.extract_strided_slice %66 {offsets = [0, 32], sizes = [8, 32], strides = [1, 1]} : vector<8x128xf32> to vector<8x32xf32>
      %77 = arith.addf %75, %76 : vector<8x32xf32>
      %78 = arith.negf %77 : vector<8x32xf32>
      %79 = math.exp %78 : vector<8x32xf32>
      %cst_42 = arith.constant 1.000000e+00 : f32
      %80 = vector.broadcast %cst_42 : f32 to vector<8x32xf32>
      %81 = arith.addf %80, %79 : vector<8x32xf32>
      %82 = arith.divf %80, %81 : vector<8x32xf32>
      %83 = vector.extract_strided_slice %60 {offsets = [0, 64], sizes = [8, 32], strides = [1, 1]} : vector<8x128xf32> to vector<8x32xf32>
      %84 = vector.extract_strided_slice %66 {offsets = [0, 64], sizes = [8, 32], strides = [1, 1]} : vector<8x128xf32> to vector<8x32xf32>
      %85 = arith.mulf %74, %84 : vector<8x32xf32>
      %86 = arith.addf %83, %85 : vector<8x32xf32>
      %87 = math.tanh %86 : vector<8x32xf32>
      %cst_43 = arith.constant 1.000000e+00 : f32
      %88 = vector.broadcast %cst_43 : f32 to vector<8x32xf32>
      %89 = arith.subf %88, %82 : vector<8x32xf32>
      %90 = arith.mulf %89, %87 : vector<8x32xf32>
      %91 = arith.mulf %82, %55 : vector<8x32xf32>
      %92 = arith.addf %90, %91 : vector<8x32xf32>
      %c1_44 = arith.constant 1 : index
      %c0_45 = arith.constant 0 : index
      %c0_46 = arith.constant 0 : index
      %93 = vector.load %arg20[%c1_44, %c0_45, %c0_46] : memref<2x8x32xf32, #tpu.memory_space<vmem>>, vector<1x8x32xf32>
      %94 = vector.shape_cast %93 : vector<1x8x32xf32> to vector<8x32xf32>
      %95 = vector.shape_cast %92 : vector<8x32xf32> to vector<1x8x32xf32>
      tpu.vector_store %arg20[%c1_44, %c0_45, %c0_46], %95 {strides = array<i32>} : memref<2x8x32xf32, #tpu.memory_space<vmem>>, vector<1x8x32xf32>,
      %96 = arith.truncf %92 : vector<8x32xf32> to vector<8x32xbf16>
      %c0_47 = arith.constant 0 : index
      %c0_48 = arith.constant 0 : index
      %c0_49 = arith.constant 0 : index
      %97 = vector.load %arg4[%c0_47, %c0_48, %c0_49] : memref<8x8x32xbf16, #tpu.memory_space<vmem>>, vector<8x8x32xbf16>
      %98 = vector.shape_cast %96 : vector<8x32xbf16> to vector<8x1x32xbf16>
      "tpu.trace_start"() <{level = 10 : i32, message = "bqh,blh->bql"}> : () -> ()
      %cst_50 = arith.constant dense<0.000000e+00> : vector<8x1x8xf32>
      %99 = tpu.matmul %98, %97, %cst_50 {dimension_numbers = #tpu.dot_dimension_numbers<[2], [2], [1], [1], [0, 0, 0, 1, 1, 1], [0], [0]>} : vector<8x1x32xbf16>, vector<8x8x32xbf16>, vector<8x1x8xf32> -> vector<8x1x8xf32>
      "tpu.trace_stop"() : () -> ()
      %100 = vector.shape_cast %99 : vector<8x1x8xf32> to vector<8x8xf32>
      %c0_51 = arith.constant 0 : index
      %c0_52 = arith.constant 0 : index
      %101 = vector.load %arg5[%c0_51, %c0_52] : memref<8x8xf32, #tpu.memory_space<vmem>>, vector<8x8xf32>
      %102 = arith.addf %100, %101 : vector<8x8xf32>
      %cst_53 = arith.constant dense<0xFF800000> : vector<8xf32>
      %103 = vector.multi_reduction <maximumf>, %102, %cst_53 [1] : vector<8x8xf32> to vector<8xf32>
      %104 = vector.shape_cast %103 : vector<8xf32> to vector<8x1xf32>
      %105 = vector.broadcast %104 : vector<8x1xf32> to vector<8x8xf32>
      %106 = arith.subf %102, %105 : vector<8x8xf32>
      %107 = math.exp %106 : vector<8x8xf32>
      %cst_54 = arith.constant dense<0.000000e+00> : vector<8xf32>
      %108 = vector.multi_reduction <add>, %107, %cst_54 [1] : vector<8x8xf32> to vector<8xf32>
      %109 = vector.shape_cast %108 : vector<8xf32> to vector<8x1xf32>
      %110 = tpu.reciprocal %109 {approx = true} : vector<8x1xf32> -> vector<8x1xf32>
      %111 = arith.truncf %107 : vector<8x8xf32> to vector<8x8xbf16>
      %112 = vector.shape_cast %111 : vector<8x8xbf16> to vector<8x1x8xbf16>
      "tpu.trace_start"() <{level = 10 : i32, message = "bql,blh->bqh"}> : () -> ()
      %cst_55 = arith.constant dense<0.000000e+00> : vector<8x1x32xf32>
      %113 = tpu.matmul %112, %97, %cst_55 {dimension_numbers = #tpu.dot_dimension_numbers<[2], [1], [1], [2], [0, 0, 0, 1, 1, 2], [0], [0]>} : vector<8x1x8xbf16>, vector<8x8x32xbf16>, vector<8x1x32xf32> -> vector<8x1x32xf32>
      "tpu.trace_stop"() : () -> ()
      %114 = vector.shape_cast %113 : vector<8x1x32xf32> to vector<8x32xf32>
      %115 = vector.broadcast %110 : vector<8x1xf32> to vector<8x32xf32>
      %116 = arith.mulf %114, %115 : vector<8x32xf32>
      %c0_56 = arith.constant 0 : index
      %c0_57 = arith.constant 0 : index
      %117 = vector.load %arg14[%c0_56, %c0_57] : memref<32x32xbf16, #tpu.memory_space<vmem>>, vector<32x32xbf16>
      %cst_58 = arith.constant dense<0.000000e+00> : vector<8x32xf32>
      %118 = tpu.matmul %96, %117, %cst_58 {dimension_numbers = #tpu.dot_dimension_numbers<[1], [0], [0], [1], [0, 0, 1, 1], [], []>} : vector<8x32xbf16>, vector<32x32xbf16>, vector<8x32xf32> -> vector<8x32xf32>
      %119 = arith.truncf %116 : vector<8x32xf32> to vector<8x32xbf16>
      %c0_59 = arith.constant 0 : index
      %c0_60 = arith.constant 0 : index
      %120 = vector.load %arg15[%c0_59, %c0_60] : memref<32x32xbf16, #tpu.memory_space<vmem>>, vector<32x32xbf16>
      %cst_61 = arith.constant dense<0.000000e+00> : vector<8x32xf32>
      %121 = tpu.matmul %119, %120, %cst_61 {dimension_numbers = #tpu.dot_dimension_numbers<[1], [0], [0], [1], [0, 0, 1, 1], [], []>} : vector<8x32xbf16>, vector<32x32xbf16>, vector<8x32xf32> -> vector<8x32xf32>
      %122 = arith.addf %118, %121 : vector<8x32xf32>
      %c0_62 = arith.constant 0 : index
      %c0_63 = arith.constant 0 : index
      %123 = vector.load %arg16[%c0_62, %c0_63] : memref<1x32xf32, #tpu.memory_space<vmem>>, vector<1x32xf32>
      %124 = vector.broadcast %123 : vector<1x32xf32> to vector<8x32xf32>
      %125 = arith.addf %122, %124 : vector<8x32xf32>
      %126 = math.tanh %125 : vector<8x32xf32>
      %127 = arith.truncf %126 : vector<8x32xf32> to vector<8x32xbf16>
      %c0_64 = arith.constant 0 : index
      %c0_65 = arith.constant 0 : index
      %128 = vector.load %arg21[%c0_64, %c0_65] : memref<8x32xbf16, #tpu.memory_space<vmem>>, vector<8x32xbf16>
      tpu.vector_store %arg21[%c0_64, %c0_65], %127 {strides = array<i32>} : memref<8x32xbf16, #tpu.memory_space<vmem>>, vector<8x32xbf16>,
    } else {
    }
    %c0 = arith.constant 0 : index
    %c0_1 = arith.constant 0 : index
    %3 = vector.load %arg21[%c0, %c0_1] : memref<8x32xbf16, #tpu.memory_space<vmem>>, vector<8x32xbf16>
    %c0_2 = arith.constant 0 : index
    %c0_3 = arith.constant 0 : index
    %4 = vector.load %arg17[%c0_2, %c0_3] : memref<32x128xbf16, #tpu.memory_space<vmem>>, vector<32x128xbf16>
    %cst = arith.constant dense<0.000000e+00> : vector<8x128xf32>
    %5 = tpu.matmul %3, %4, %cst {dimension_numbers = #tpu.dot_dimension_numbers<[1], [0], [0], [1], [0, 0, 1, 1], [], []>} : vector<8x32xbf16>, vector<32x128xbf16>, vector<8x128xf32> -> vector<8x128xf32>
    %c0_4 = arith.constant 0 : index
    %c0_5 = arith.constant 0 : index
    %6 = vector.load %arg18[%c0_4, %c0_5] : memref<1x128xf32, #tpu.memory_space<vmem>>, vector<1x128xf32>
    %7 = vector.broadcast %6 : vector<1x128xf32> to vector<8x128xf32>
    %8 = arith.addf %5, %7 : vector<8x128xf32>
    %c0_6 = arith.constant 0 : index
    %c0_7 = arith.constant 0 : index
    %9 = vector.load %arg19[%c0_6, %c0_7] : memref<8x128xf32, #tpu.memory_space<vmem>>, vector<8x128xf32>
    tpu.vector_store %arg19[%c0_6, %c0_7], %8 {strides = array<i32>} : memref<8x128xf32, #tpu.memory_space<vmem>>, vector<8x128xf32>,
    return
  }
  func.func @transform_0(%arg0: i32, %arg1: i32) -> (i32, i32) {
    %c0_i32 = arith.constant 0 : i32
    %c0_i32_0 = arith.constant 0 : i32
    return %arg0, %c0_i32 : i32, i32
  }
  func.func @transform_1(%arg0: i32, %arg1: i32) -> (i32, i32, i32) {
    %c0_i32 = arith.constant 0 : i32
    %c0_i32_0 = arith.constant 0 : i32
    %c0_i32_1 = arith.constant 0 : i32
    return %c0_i32, %arg0, %c0_i32_0 : i32, i32, i32
  }
  func.func @transform_2(%arg0: i32, %arg1: i32) -> (i32, i32, i32) {
    %c0_i32 = arith.constant 0 : i32
    %c0_i32_0 = arith.constant 0 : i32
    %c0_i32_1 = arith.constant 0 : i32
    return %arg0, %c0_i32, %c0_i32_0 : i32, i32, i32
  }
  func.func @transform_3(%arg0: i32, %arg1: i32) -> (i32, i32) {
    %c0_i32 = arith.constant 0 : i32
    %c0_i32_0 = arith.constant 0 : i32
    return %arg0, %c0_i32 : i32, i32
  }
  func.func @transform_4(%arg0: i32, %arg1: i32) -> (i32, i32) {
    %c0_i32 = arith.constant 0 : i32
    %c0_i32_0 = arith.constant 0 : i32
    %c0_i32_1 = arith.constant 0 : i32
    return %c0_i32, %c0_i32_0 : i32, i32
  }
  func.func @transform_5(%arg0: i32, %arg1: i32) -> (i32, i32) {
    %c0_i32 = arith.constant 0 : i32
    %c0_i32_0 = arith.constant 0 : i32
    %c0_i32_1 = arith.constant 0 : i32
    return %c0_i32, %c0_i32_0 : i32, i32
  }
  func.func @transform_6(%arg0: i32, %arg1: i32) -> (i32, i32) {
    %c0_i32 = arith.constant 0 : i32
    %c0_i32_0 = arith.constant 0 : i32
    %c0_i32_1 = arith.constant 0 : i32
    return %c0_i32, %c0_i32_0 : i32, i32
  }
  func.func @transform_7(%arg0: i32, %arg1: i32) -> (i32, i32) {
    %c0_i32 = arith.constant 0 : i32
    %c0_i32_0 = arith.constant 0 : i32
    %c0_i32_1 = arith.constant 0 : i32
    return %c0_i32, %c0_i32_0 : i32, i32
  }
  func.func @transform_8(%arg0: i32, %arg1: i32) -> (i32, i32) {
    %c0_i32 = arith.constant 0 : i32
    %c0_i32_0 = arith.constant 0 : i32
    %c0_i32_1 = arith.constant 0 : i32
    return %c0_i32, %c0_i32_0 : i32, i32
  }
  func.func @transform_9(%arg0: i32, %arg1: i32) -> (i32, i32) {
    %c0_i32 = arith.constant 0 : i32
    %c0_i32_0 = arith.constant 0 : i32
    %c0_i32_1 = arith.constant 0 : i32
    return %c0_i32, %c0_i32_0 : i32, i32
  }
  func.func @transform_10(%arg0: i32, %arg1: i32) -> (i32, i32) {
    %c0_i32 = arith.constant 0 : i32
    %c0_i32_0 = arith.constant 0 : i32
    %c0_i32_1 = arith.constant 0 : i32
    return %c0_i32, %c0_i32_0 : i32, i32
  }
  func.func @transform_11(%arg0: i32, %arg1: i32) -> (i32, i32) {
    %c0_i32 = arith.constant 0 : i32
    %c0_i32_0 = arith.constant 0 : i32
    %c0_i32_1 = arith.constant 0 : i32
    return %c0_i32, %c0_i32_0 : i32, i32
  }
  func.func @transform_12(%arg0: i32, %arg1: i32) -> (i32, i32) {
    %c0_i32 = arith.constant 0 : i32
    %c0_i32_0 = arith.constant 0 : i32
    %c0_i32_1 = arith.constant 0 : i32
    return %c0_i32, %c0_i32_0 : i32, i32
  }
  func.func @transform_13(%arg0: i32, %arg1: i32) -> (i32, i32) {
    %c0_i32 = arith.constant 0 : i32
    %c0_i32_0 = arith.constant 0 : i32
    %c0_i32_1 = arith.constant 0 : i32
    return %c0_i32, %c0_i32_0 : i32, i32
  }
  func.func @transform_14(%arg0: i32, %arg1: i32) -> (i32, i32) {
    %c0_i32 = arith.constant 0 : i32
    %c0_i32_0 = arith.constant 0 : i32
    %c0_i32_1 = arith.constant 0 : i32
    return %c0_i32, %c0_i32_0 : i32, i32
  }
  func.func @transform_15(%arg0: i32, %arg1: i32) -> (i32, i32) {
    %c0_i32 = arith.constant 0 : i32
    %c0_i32_0 = arith.constant 0 : i32
    return %c0_i32, %arg1 : i32, i32
  }
  func.func @transform_16(%arg0: i32, %arg1: i32) -> (i32, i32) {
    %c0_i32 = arith.constant 0 : i32
    %c0_i32_0 = arith.constant 0 : i32
    return %c0_i32, %arg1 : i32, i32
  }
  func.func @transform_17(%arg0: i32, %arg1: i32) -> (i32, i32) {
    %c0_i32 = arith.constant 0 : i32
    return %arg0, %arg1 : i32, i32
  }
  func.func @transform_18(%arg0: i32, %arg1: i32) -> (i32, i32, i32) {
    %c0_i32 = arith.constant 0 : i32
    %c0_i32_0 = arith.constant 0 : i32
    %c0_i32_1 = arith.constant 0 : i32
    return %c0_i32, %arg0, %c0_i32_0 : i32, i32, i32
  }
}

</mosaic_0001>

<llo_original>
// kernel: tpu_custom_call.1
$region0: #{tpu_custom_call.1}
  #allocation0 [shape = 'u32[]', space=smem, size = 0x4, offset = 0x4, fixed_abs, tag = 'smem constant byte address 0x4 - core index']
  #allocation1 [shape = 'u32[144,128]{1,0:T(1,128)}', space=vmem, size = 0x12000, scoped, tag = 'internal scratch']
  #allocation2 [shape = 'bf16[8,32]{1,0:T(8,128)(2,1)}', space=vmem, size = 0x800, scoped, tag = 'scratch operand']
  %s0 = inlined_call_operand.vmem [shape: bf16[8,32], index: 0, kind: input, shape index: {}]
  %s1 = inlined_call_operand.hbm [shape: f32[2,8,32], index: 1, kind: input, shape index: {}, may-alias: {1,18}]
  %s2 = inlined_call_operand.vmem [shape: bf16[8,8,32], index: 2, kind: input, shape index: {}]
  %s3 = inlined_call_operand.hbm [shape: f32[8,8], index: 3, kind: input, shape index: {}]
  %s4 = inlined_call_operand.vmem [shape: bf16[32,128], index: 4, kind: input, shape index: {}]
  %s5 = inlined_call_operand.vmem [shape: bf16[32,128], index: 5, kind: input, shape index: {}]
  %s6 = inlined_call_operand.vmem [shape: f32[1,128], index: 6, kind: input, shape index: {}]
  %s7 = inlined_call_operand.hbm [shape: f32[1,128], index: 7, kind: input, shape index: {}]
  %s8 = inlined_call_operand.hbm [shape: bf16[32,128], index: 8, kind: input, shape index: {}]
  %s9 = inlined_call_operand.hbm [shape: bf16[32,128], index: 9, kind: input, shape index: {}]
  %s10 = inlined_call_operand.hbm [shape: f32[1,128], index: 10, kind: input, shape index: {}]
  %s11 = inlined_call_operand.hbm [shape: f32[1,128], index: 11, kind: input, shape index: {}]
  %s12 = inlined_call_operand.hbm [shape: bf16[32,32], index: 12, kind: input, shape index: {}]
  %s13 = inlined_call_operand.hbm [shape: bf16[32,32], index: 13, kind: input, shape index: {}]
  %s14 = inlined_call_operand.hbm [shape: f32[1,32], index: 14, kind: input, shape index: {}]
  %s15 = inlined_call_operand.hbm [shape: bf16[32,128], index: 15, kind: input, shape index: {}]
  %s16 = inlined_call_operand.hbm [shape: f32[1,128], index: 16, kind: input, shape index: {}]
  %s17 = inlined_call_operand.hbm [shape: f32[8,128], index: 17, kind: output, shape index: {0}]
  %s18 = inlined_call_operand.hbm [shape: f32[2,8,32], index: 18, kind: output, shape index: {1}, may-alias: {1,18}]
  %19 = xla_tuple %s17, %s18
  %s20 = sld [smem:[#allocation0]]
  $region138: #{tpu_custom_call.1} parent=0
    _
  %s22 = ssub.s32 1, %s20
  %s23 = scalar_select 0, %s22, %s20
  $region1: #{tpu_custom_call.1} parent=0
    #allocation3 [shape = 'u8[8192]{0}', space=vmem, size = 0x2000, scoped, tag = 'input window, operand 1, single buffered']
    #allocation4 [shape = 's32[1]{0}', space=sflag, size = 0x4, scoped, tag = 'scoped memory for tpu_custom_call.1']
    #allocation5 [shape = 's32[1]{0}', space=sflag, size = 0x4, scoped, tag = 'scoped memory for tpu_custom_call.1']
    #allocation6 [shape = 'u8[4096]{0}', space=vmem, size = 0x1000, scoped, tag = 'input window, operand 3, single buffered']
    #allocation7 [shape = 's32[1]{0}', space=sflag, size = 0x4, scoped, tag = 'scoped memory for tpu_custom_call.1']
    #allocation8 [shape = 'u8[512]{0}', space=vmem, size = 0x400, scoped, tag = 'input window, operand 7, single buffered']
    #allocation9 [shape = 'u8[8192]{0}', space=vmem, size = 0x2000, scoped, tag = 'input window, operand 8, single buffered']
    #allocation10 [shape = 's32[1]{0}', space=sflag, size = 0x4, scoped, tag = 'scoped memory for tpu_custom_call.1']
    #allocation11 [shape = 'u8[8192]{0}', space=vmem, size = 0x2000, scoped, tag = 'input window, operand 9, single buffered']
    #allocation12 [shape = 'u8[512]{0}', space=vmem, size = 0x400, scoped, tag = 'input window, operand 10, single buffered']
    #allocation13 [shape = 's32[1]{0}', space=sflag, size = 0x4, scoped, tag = 'scoped memory for tpu_custom_call.1']
    #allocation14 [shape = 'u8[512]{0}', space=vmem, size = 0x400, scoped, tag = 'input window, operand 11, single buffered']
    #allocation15 [shape = 'u8[8192]{0}', space=vmem, size = 0x2000, scoped, tag = 'input window, operand 12, single buffered']
    #allocation16 [shape = 's32[1]{0}', space=sflag, size = 0x4, scoped, tag = 'scoped memory for tpu_custom_call.1']
    #allocation17 [shape = 'u8[8192]{0}', space=vmem, size = 0x2000, scoped, tag = 'input window, operand 13, single buffered']
    #allocation18 [shape = 'u8[512]{0}', space=vmem, size = 0x400, scoped, tag = 'input window, operand 14, single buffered']
    #allocation19 [shape = 's32[1]{0}', space=sflag, size = 0x4, scoped, tag = 'scoped memory for tpu_custom_call.1']
    #allocation20 [shape = 'u8[8192]{0}', space=vmem, size = 0x2000, scoped, tag = 'input window, operand 15, single buffered']
    #allocation21 [shape = 'u8[512]{0}', space=vmem, size = 0x400, scoped, tag = 'input window, operand 16, single buffered']
    #allocation22 [shape = 's32[1]{0}', space=sflag, size = 0x4, scoped, tag = 'scoped memory for tpu_custom_call.1']
    #allocation23 [shape = 'u8[4096]{0}', space=vmem, size = 0x1000, scoped, tag = 'output window, operand 0, single buffered']
    #allocation24 [shape = 'u8[8192]{0}', space=vmem, size = 0x2000, scoped, tag = 'output window, operand 1, single buffered']
    #allocation25 [shape = 's32[1]{0}', space=sflag, size = 0x4, scoped, tag = 'scoped memory for tpu_custom_call.1']
    %24 = vsyncpa [#allocation4], 0
    %25 = vsyncpa [#allocation7], 0
    %26 = vsyncpa [#allocation10], 0
    %27 = vsyncpa [#allocation13], 0
    %28 = vsyncpa [#allocation16], 0
    %29 = vsyncpa [#allocation19], 0
    %30 = vsyncpa [#allocation22], 0
    %31 = vsyncpa [#allocation5], 0
    %32 = vsyncpa [#allocation25], 0
    // Predicated region
    $region2: #{tpu_custom_call.1} parent=1 // pred_check
      _
    $region3: #{tpu_custom_call.1} parent=1 // pred_check_branch
      %34 = sbr.rel (0) target = $region5
    $region4: #{tpu_custom_call.1} parent=1 // pred_region
      _
    $region5: #{tpu_custom_call.1} parent=1 // pred_fallthru
      _
    // Predicated region
    $region6: #{tpu_custom_call.1} parent=1 // pred_check
      _
    $region7: #{tpu_custom_call.1} parent=1 // pred_check_branch
      %36 = sbr.rel (0) target = $region9
    $region8: #{tpu_custom_call.1} parent=1 // pred_region
      %s38 = ssub.s32 256, 256
      %39 = vsyncadd [#allocation4], %s38
      %s40 = sshll.u32 [#allocation3], 4
      %s41 = int_to_ptr.vmem [resolvable:$true] %s40
      %46 = dma.hbm_to_vmem [thread:$0]  %s1, 256, %s41, [#allocation4], 128, 128, 8
    $region9: #{tpu_custom_call.1} parent=1 // pred_fallthru
      _
    // Predicated region
    $region10: #{tpu_custom_call.1} parent=1 // pred_check
      _
    $region11: #{tpu_custom_call.1} parent=1 // pred_check_branch
      %48 = sbr.rel (0) target = $region13
    $region12: #{tpu_custom_call.1} parent=1 // pred_region
      _
    $region13: #{tpu_custom_call.1} parent=1 // pred_fallthru
      _
    // Predicated region
    $region14: #{tpu_custom_call.1} parent=1 // pred_check
      _
    $region15: #{tpu_custom_call.1} parent=1 // pred_check_branch
      %50 = sbr.rel (0) target = $region17
    $region16: #{tpu_custom_call.1} parent=1 // pred_region
      %s52 = ssub.s32 128, 128
      %53 = vsyncadd [#allocation7], %s52
      %s55 = sshll.u32 [#allocation6], 4
      %s56 = int_to_ptr.vmem [resolvable:$true] %s55
      %58 = dma.hbm_to_vmem [thread:$0]  %s3, 128, %s56, [#allocation7]
    $region17: #{tpu_custom_call.1} parent=1 // pred_fallthru
      _
    // Predicated region
    $region18: #{tpu_custom_call.1} parent=1 // pred_check
      _
    $region19: #{tpu_custom_call.1} parent=1 // pred_check_branch
      %60 = sbr.rel (0) target = $region21
    $region20: #{tpu_custom_call.1} parent=1 // pred_region
      _
    $region21: #{tpu_custom_call.1} parent=1 // pred_fallthru
      _
    // Predicated region
    $region22: #{tpu_custom_call.1} parent=1 // pred_check
      _
    $region23: #{tpu_custom_call.1} parent=1 // pred_check_branch
      %62 = sbr.rel (0) target = $region25
    $region24: #{tpu_custom_call.1} parent=1 // pred_region
      _
    $region25: #{tpu_custom_call.1} parent=1 // pred_fallthru
      _
    // Predicated region
    $region26: #{tpu_custom_call.1} parent=1 // pred_check
      _
    $region27: #{tpu_custom_call.1} parent=1 // pred_check_branch
      %64 = sbr.rel (0) target = $region29
    $region28: #{tpu_custom_call.1} parent=1 // pred_region
      _
    $region29: #{tpu_custom_call.1} parent=1 // pred_fallthru
      _
    // Predicated region
    $region30: #{tpu_custom_call.1} parent=1 // pred_check
      _
    $region31: #{tpu_custom_call.1} parent=1 // pred_check_branch
      %66 = sbr.rel (0) target = $region33
    $region32: #{tpu_custom_call.1} parent=1 // pred_region
      %s68 = ssub.s32 16, 16
      %69 = vsyncadd [#allocation7], %s68
      %s71 = sshll.u32 [#allocation8], 4
      %s72 = int_to_ptr.vmem [resolvable:$true] %s71
      %74 = dma.hbm_to_vmem [thread:$0]  %s7, 16, %s72, [#allocation7]
    $region33: #{tpu_custom_call.1} parent=1 // pred_fallthru
      _
    // Predicated region
    $region34: #{tpu_custom_call.1} parent=1 // pred_check
      _
    $region35: #{tpu_custom_call.1} parent=1 // pred_check_branch
      %76 = sbr.rel (0) target = $region37
    $region36: #{tpu_custom_call.1} parent=1 // pred_region
      %s78 = ssub.s32 256, 256
      %79 = vsyncadd [#allocation10], %s78
      %s80 = sshll.u32 [#allocation9], 4
      %s81 = int_to_ptr.vmem [resolvable:$true] %s80
      %86 = dma.hbm_to_vmem [thread:$0]  %s8, 256, %s81, [#allocation10], 64, 64, 4
    $region37: #{tpu_custom_call.1} parent=1 // pred_fallthru
      _
    // Predicated region
    $region38: #{tpu_custom_call.1} parent=1 // pred_check
      _
    $region39: #{tpu_custom_call.1} parent=1 // pred_check_branch
      %88 = sbr.rel (0) target = $region41
    $region40: #{tpu_custom_call.1} parent=1 // pred_region
      %s90 = ssub.s32 256, 256
      %91 = vsyncadd [#allocation10], %s90
      %s92 = sshll.u32 [#allocation11], 4
      %s93 = int_to_ptr.vmem [resolvable:$true] %s92
      %98 = dma.hbm_to_vmem [thread:$0]  %s9, 256, %s93, [#allocation10], 64, 64, 4
    $region41: #{tpu_custom_call.1} parent=1 // pred_fallthru
      _
    // Predicated region
    $region42: #{tpu_custom_call.1} parent=1 // pred_check
      _
    $region43: #{tpu_custom_call.1} parent=1 // pred_check_branch
      %100 = sbr.rel (0) target = $region45
    $region44: #{tpu_custom_call.1} parent=1 // pred_region
      %s102 = ssub.s32 16, 16
      %103 = vsyncadd [#allocation13], %s102
      %s105 = sshll.u32 [#allocation12], 4
      %s106 = int_to_ptr.vmem [resolvable:$true] %s105
      %108 = dma.hbm_to_vmem [thread:$0]  %s10, 16, %s106, [#allocation13]
    $region45: #{tpu_custom_call.1} parent=1 // pred_fallthru
      _
    // Predicated region
    $region46: #{tpu_custom_call.1} parent=1 // pred_check
      _
    $region47: #{tpu_custom_call.1} parent=1 // pred_check_branch
      %110 = sbr.rel (0) target = $region49
    $region48: #{tpu_custom_call.1} parent=1 // pred_region
      %s112 = ssub.s32 16, 16
      %113 = vsyncadd [#allocation13], %s112
      %s115 = sshll.u32 [#allocation14], 4
      %s116 = int_to_ptr.vmem [resolvable:$true] %s115
      %118 = dma.hbm_to_vmem [thread:$0]  %s11, 16, %s116, [#allocation13]
    $region49: #{tpu_custom_call.1} parent=1 // pred_fallthru
      _
    // Predicated region
    $region50: #{tpu_custom_call.1} parent=1 // pred_check
      _
    $region51: #{tpu_custom_call.1} parent=1 // pred_check_branch
      %120 = sbr.rel (0) target = $region53
    $region52: #{tpu_custom_call.1} parent=1 // pred_region
      %s122 = ssub.s32 256, 256
      %123 = vsyncadd [#allocation16], %s122
      %s124 = sshll.u32 [#allocation15], 4
      %s125 = int_to_ptr.vmem [resolvable:$true] %s124
      %130 = dma.hbm_to_vmem [thread:$0]  %s12, 256, %s125, [#allocation16], 64, 64, 4
    $region53: #{tpu_custom_call.1} parent=1 // pred_fallthru
      _
    // Predicated region
    $region54: #{tpu_custom_call.1} parent=1 // pred_check
      _
    $region55: #{tpu_custom_call.1} parent=1 // pred_check_branch
      %132 = sbr.rel (0) target = $region57
    $region56: #{tpu_custom_call.1} parent=1 // pred_region
      %s134 = ssub.s32 256, 256
      %135 = vsyncadd [#allocation16], %s134
      %s136 = sshll.u32 [#allocation17], 4
      %s137 = int_to_ptr.vmem [resolvable:$true] %s136
      %142 = dma.hbm_to_vmem [thread:$0]  %s13, 256, %s137, [#allocation16], 64, 64, 4
    $region57: #{tpu_custom_call.1} parent=1 // pred_fallthru
      _
    // Predicated region
    $region58: #{tpu_custom_call.1} parent=1 // pred_check
      _
    $region59: #{tpu_custom_call.1} parent=1 // pred_check_branch
      %144 = sbr.rel (0) target = $region61
    $region60: #{tpu_custom_call.1} parent=1 // pred_region
      %s146 = ssub.s32 16, 16
      %147 = vsyncadd [#allocation19], %s146
      %s149 = sshll.u32 [#allocation18], 4
      %s150 = int_to_ptr.vmem [resolvable:$true] %s149
      %152 = dma.hbm_to_vmem [thread:$0]  %s14, 16, %s150, [#allocation19]
    $region61: #{tpu_custom_call.1} parent=1 // pred_fallthru
      _
    // Predicated region
    $region62: #{tpu_custom_call.1} parent=1 // pred_check
      _
    $region63: #{tpu_custom_call.1} parent=1 // pred_check_branch
      %154 = sbr.rel (0) target = $region65
    $region64: #{tpu_custom_call.1} parent=1 // pred_region
      %s156 = ssub.s32 256, 256
      %157 = vsyncadd [#allocation19], %s156
      %s158 = sshll.u32 [#allocation20], 4
      %s159 = int_to_ptr.vmem [resolvable:$true] %s158
      %164 = dma.hbm_to_vmem [thread:$0]  %s15, 256, %s159, [#allocation19], 64, 64, 4
    $region65: #{tpu_custom_call.1} parent=1 // pred_fallthru
      _
    // Predicated region
    $region66: #{tpu_custom_call.1} parent=1 // pred_check
      _
    $region67: #{tpu_custom_call.1} parent=1 // pred_check_branch
      %166 = sbr.rel (0) target = $region69
    $region68: #{tpu_custom_call.1} parent=1 // pred_region
      %s168 = ssub.s32 16, 16
      %169 = vsyncadd [#allocation22], %s168
      %s171 = sshll.u32 [#allocation21], 4
      %s172 = int_to_ptr.vmem [resolvable:$true] %s171
      %174 = dma.hbm_to_vmem [thread:$0]  %s16, 16, %s172, [#allocation22]
    $region69: #{tpu_custom_call.1} parent=1 // pred_fallthru
      _
    // Predicated region
    $region70: #{tpu_custom_call.1} parent=1 // pred_check
      _
    $region71: #{tpu_custom_call.1} parent=1 // pred_check_branch
      %176 = sbr.rel (0) target = $region73
    $region72: #{tpu_custom_call.1} parent=1 // pred_region
      %177 = dma.done [#allocation4], 256
    $region73: #{tpu_custom_call.1} parent=1 // pred_fallthru
      _
    // Predicated region
    $region74: #{tpu_custom_call.1} parent=1 // pred_check
      _
    $region75: #{tpu_custom_call.1} parent=1 // pred_check_branch
      %179 = sbr.rel (0) target = $region77
    $region76: #{tpu_custom_call.1} parent=1 // pred_region
      %180 = dma.done [#allocation7], 128
    $region77: #{tpu_custom_call.1} parent=1 // pred_fallthru
      _
    // Predicated region
    $region78: #{tpu_custom_call.1} parent=1 // pred_check
      _
    $region79: #{tpu_custom_call.1} parent=1 // pred_check_branch
      %182 = sbr.rel (0) target = $region81
    $region80: #{tpu_custom_call.1} parent=1 // pred_region
      %183 = dma.done [#allocation7], 16
    $region81: #{tpu_custom_call.1} parent=1 // pred_fallthru
      _
    // Predicated region
    $region82: #{tpu_custom_call.1} parent=1 // pred_check
      _
    $region83: #{tpu_custom_call.1} parent=1 // pred_check_branch
      %185 = sbr.rel (0) target = $region85
    $region84: #{tpu_custom_call.1} parent=1 // pred_region
      %186 = dma.done [#allocation10], 256
    $region85: #{tpu_custom_call.1} parent=1 // pred_fallthru
      _
    // Predicated region
    $region86: #{tpu_custom_call.1} parent=1 // pred_check
      _
    $region87: #{tpu_custom_call.1} parent=1 // pred_check_branch
      %188 = sbr.rel (0) target = $region89
    $region88: #{tpu_custom_call.1} parent=1 // pred_region
      %189 = dma.done [#allocation10], 256
    $region89: #{tpu_custom_call.1} parent=1 // pred_fallthru
      _
    // Predicated region
    $region90: #{tpu_custom_call.1} parent=1 // pred_check
      _
    $region91: #{tpu_custom_call.1} parent=1 // pred_check_branch
      %191 = sbr.rel (0) target = $region93
    $region92: #{tpu_custom_call.1} parent=1 // pred_region
      %192 = dma.done [#allocation13], 16
    $region93: #{tpu_custom_call.1} parent=1 // pred_fallthru
      _
    // Predicated region
    $region94: #{tpu_custom_call.1} parent=1 // pred_check
      _
    $region95: #{tpu_custom_call.1} parent=1 // pred_check_branch
      %194 = sbr.rel (0) target = $region97
    $region96: #{tpu_custom_call.1} parent=1 // pred_region
      %195 = dma.done [#allocation13], 16
    $region97: #{tpu_custom_call.1} parent=1 // pred_fallthru
      _
    // Predicated region
    $region98: #{tpu_custom_call.1} parent=1 // pred_check
      _
    $region99: #{tpu_custom_call.1} parent=1 // pred_check_branch
      %197 = sbr.rel (0) target = $region101
    $region100: #{tpu_custom_call.1} parent=1 // pred_region
      %198 = dma.done [#allocation16], 256
    $region101: #{tpu_custom_call.1} parent=1 // pred_fallthru
      _
    // Predicated region
    $region102: #{tpu_custom_call.1} parent=1 // pred_check
      _
    $region103: #{tpu_custom_call.1} parent=1 // pred_check_branch
      %200 = sbr.rel (0) target = $region105
    $region104: #{tpu_custom_call.1} parent=1 // pred_region
      %201 = dma.done [#allocation16], 256
    $region105: #{tpu_custom_call.1} parent=1 // pred_fallthru
      _
    // Predicated region
    $region106: #{tpu_custom_call.1} parent=1 // pred_check
      _
    $region107: #{tpu_custom_call.1} parent=1 // pred_check_branch
      %203 = sbr.rel (0) target = $region109
    $region108: #{tpu_custom_call.1} parent=1 // pred_region
      %204 = dma.done [#allocation19], 16
    $region109: #{tpu_custom_call.1} parent=1 // pred_fallthru
      _
    // Predicated region
    $region110: #{tpu_custom_call.1} parent=1 // pred_check
      _
    $region111: #{tpu_custom_call.1} parent=1 // pred_check_branch
      %206 = sbr.rel (0) target = $region113
    $region112: #{tpu_custom_call.1} parent=1 // pred_region
      %207 = dma.done [#allocation19], 256
    $region113: #{tpu_custom_call.1} parent=1 // pred_fallthru
      _
    // Predicated region
    $region114: #{tpu_custom_call.1} parent=1 // pred_check
      _
    $region115: #{tpu_custom_call.1} parent=1 // pred_check_branch
      %209 = sbr.rel (0) target = $region117
    $region116: #{tpu_custom_call.1} parent=1 // pred_region
      %210 = dma.done [#allocation22], 16
    $region117: #{tpu_custom_call.1} parent=1 // pred_fallthru
      _
    %p212 = scmp.eq.s32.totalorder 0, 0
    // Predicated region
    $region118: #{tpu_custom_call.1} parent=1 // pred_check
      %p213 = pneg %p212
    $region119: #{tpu_custom_call.1} parent=1 // pred_check_branch
      %215 = sbr.rel (%p213) target = $region121
    $region120: #{tpu_custom_call.1} parent=1 // pred_region
      %v216 = vld [vmem:[%s0] sm:$0xf]
      %v217 = vld [vmem:[#allocation3] sm:$0xff]
      %v218 = vld [vmem:[%s4] sm:$0xf]
      %v219 = vld [vmem:[%s4 + $0x4] sm:$0xf]
      %v220 = vld [vmem:[%s4 + $0x8] sm:$0xf]
      %v221 = vld [vmem:[%s4 + $0xc] sm:$0xf]
      %v222 = vld [vmem:[%s6] sm:$0x1]
      %v224 = vlaneseq
      %v225 = vshrl.u32 %v224, 7
      %v226 = vsub.s32 0, %v225
      %v227 = vrot.slane %v222, %v226
      %v233 = vunpack.c.l.b16 %v218
      %v234 = vunpack.c.l.b16 %v219
      %v235 = vunpack.c.l.b16 %v220
      %v236 = vunpack.c.l.b16 %v221
      %v237 = vpack.c.b16 %v234, %v233
      %v238 = vpack.c.b16 %v236, %v235
      %vm241 = vcmask 261120
      %v243 = vsel %vm241, %v216, 0
      %245 = vmatprep.subr.bf16.mxu0 0
      %246 = vmatpush1.bf16.msra.mxu0 %v237
      %247 = vmatprep.subr.bf16.mxu0 0
      %248 = vmatpush1.bf16.msra.mxu0 %v238
      %249 = vmatprep.subr.bf16.mxu0 0
      %250 = vmatpush1.bf16.msra.mxu0 0
      %251 = vmatprep.subr.bf16.mxu0 0
      %252 = vmatpush1.bf16.msra.mxu0 0
      %253 = vmatprep.subr.bf16.mxu0 0
      %254 = vmatpush1.bf16.msra.mxu0 0
      %255 = vmatprep.subr.bf16.mxu0 0
      %256 = vmatpush1.bf16.msra.mxu0 0
      %257 = vmatprep.subr.bf16.mxu0 0
      %258 = vmatpush1.bf16.msra.mxu0 0
      %259 = vmatprep.subr.bf16.mxu0 0
      %260 = vmatpush1.bf16.msra.mxu0 0
      %261 = vmatprep.subr.bf16.mxu0 0
      %262 = vmatpush1.bf16.msra.mxu0 0
      %263 = vmatprep.subr.bf16.mxu0 0
      %264 = vmatpush1.bf16.msra.mxu0 0
      %265 = vmatprep.subr.bf16.mxu0 0
      %266 = vmatpush1.bf16.msra.mxu0 0
      %267 = vmatprep.subr.bf16.mxu0 0
      %268 = vmatpush1.bf16.msra.mxu0 0
      %269 = vmatprep.subr.bf16.mxu0 0
      %270 = vmatpush1.bf16.msra.mxu0 0
      %271 = vmatprep.subr.bf16.mxu0 0
      %272 = vmatpush1.bf16.msra.mxu0 0
      %273 = vmatprep.subr.bf16.mxu0 0
      %274 = vmatpush1.bf16.msra.mxu0 0
      %275 = vmatprep.subr.bf16.mxu0 0
      %276 = vmatpush1.bf16.msra.mxu0 0
      %277 = vmatprep.mubr.bf16.mxu0 0
      %278 = vmatmul.mubr.bf16.gmra.mrb[0].mxu0 %v243
      %v279 = vpop.f32.mrb[0].mxu0
      %v280 = vadd.f32 %v227, %v279
      %v281 = vpop.f32.mrb[0].mxu0
      %v282 = vpop.f32.mrb[0].mxu0
      %v283 = vpop.f32.mrb[0].mxu0
      %284 = vdwg.mxu0
      %v285 = vpack.c.bf16 %v217, %v217
      %v286 = vld [vmem:[%s5] sm:$0xf]
      %v287 = vld [vmem:[%s5 + $0x4] sm:$0xf]
      %v288 = vld [vmem:[%s5 + $0x8] sm:$0xf]
      %v289 = vld [vmem:[%s5 + $0xc] sm:$0xf]
      %v290 = vld [vmem:[#allocation8] sm:$0x1]
      %v292 = vlaneseq
      %v293 = vshrl.u32 %v292, 7
      %v294 = vsub.s32 0, %v293
      %v295 = vrot.slane %v290, %v294
      %v301 = vunpack.c.l.b16 %v286
      %v302 = vunpack.c.l.b16 %v287
      %v303 = vunpack.c.l.b16 %v288
      %v304 = vunpack.c.l.b16 %v289
      %v305 = vpack.c.b16 %v302, %v301
      %v306 = vpack.c.b16 %v304, %v303
      %v310 = vsel %vm241, %v285, 0
      %312 = vmatprep.subr.bf16.mxu0 0
      %313 = vmatpush1.bf16.msra.mxu0 %v305
      %314 = vmatprep.subr.bf16.mxu0 0
      %315 = vmatpush1.bf16.msra.mxu0 %v306
      %316 = vmatprep.subr.bf16.mxu0 0
      %317 = vmatpush1.bf16.msra.mxu0 0
      %318 = vmatprep.subr.bf16.mxu0 0
      %319 = vmatpush1.bf16.msra.mxu0 0
      %320 = vmatprep.subr.bf16.mxu0 0
      %321 = vmatpush1.bf16.msra.mxu0 0
      %322 = vmatprep.subr.bf16.mxu0 0
      %323 = vmatpush1.bf16.msra.mxu0 0
      %324 = vmatprep.subr.bf16.mxu0 0
      %325 = vmatpush1.bf16.msra.mxu0 0
      %326 = vmatprep.subr.bf16.mxu0 0
      %327 = vmatpush1.bf16.msra.mxu0 0
      %328 = vmatprep.subr.bf16.mxu0 0
      %329 = vmatpush1.bf16.msra.mxu0 0
      %330 = vmatprep.subr.bf16.mxu0 0
      %331 = vmatpush1.bf16.msra.mxu0 0
      %332 = vmatprep.subr.bf16.mxu0 0
      %333 = vmatpush1.bf16.msra.mxu0 0
      %334 = vmatprep.subr.bf16.mxu0 0
      %335 = vmatpush1.bf16.msra.mxu0 0
      %336 = vmatprep.subr.bf16.mxu0 0
      %337 = vmatpush1.bf16.msra.mxu0 0
      %338 = vmatprep.subr.bf16.mxu0 0
      %339 = vmatpush1.bf16.msra.mxu0 0
      %340 = vmatprep.subr.bf16.mxu0 0
      %341 = vmatpush1.bf16.msra.mxu0 0
      %342 = vmatprep.subr.bf16.mxu0 0
      %343 = vmatpush1.bf16.msra.mxu0 0
      %344 = vmatprep.mubr.bf16.mxu0 0
      %345 = vmatmul.mubr.bf16.gmra.mrb[0].mxu0 %v310
      %v346 = vpop.f32.mrb[0].mxu0
      %v347 = vadd.f32 %v295, %v346
      %v348 = vpop.f32.mrb[0].mxu0
      %v349 = vpop.f32.mrb[0].mxu0
      %v350 = vpop.f32.mrb[0].mxu0
      %351 = vdwg.mxu0
      %v352 = vadd.f32 %v280, %v347
      %v353 = vxor.u32 %v352, 2147483648
      %v354 = vmul.f32 %v353, 1.442695
      %v355 = vpow.pop %v354
      %v356 = vadd.f32 %v355, 1.0
      %v357 = vrcp.pop %v356
      %v358 = vmul.f32 1.0, %v357
      %360 = vrot.lane.b32.xlu0 %v347, 64
      %v361 = vpop.permute.xlu0 %360
      %v363 = vmul.f32 %v358, %v361
      %365 = vrot.lane.b32.xlu0 %v363, 64
      %v366 = vpop.permute.xlu0 %365
      %v368 = vadd.f32 %v280, %v366
      %v369 = vtanh.pop %v368
      %v370 = vsub.f32 1.0, %v358
      %372 = vrot.lane.b32.xlu0 %v369, 96
      %v373 = vpop.permute.xlu0 %372
      %v375 = vmul.f32 %v370, %v373
      %377 = vrot.lane.b32.xlu0 %v217, 32
      %v378 = vpop.permute.xlu0 %377
      %v380 = vmul.f32 %v358, %v378
      %v381 = vadd.f32 %v375, %v380
      %383 = vrot.lane.b32.xlu0 %v381, 96
      %v384 = vpop.permute.xlu0 %383
      %386 = vst.msk [vmem:[#allocation24] sm:$0xff] %vm241, %v384
      %v387 = vpack.c.bf16 %v381, %v381
      %s388 = scalar_lea.vmem [#allocation3], 8
      %v389 = vld [vmem:[%s388] sm:$0xff]
      %v390 = vld [vmem:[#allocation9] sm:$0xf]
      %v391 = vld [vmem:[#allocation9 + $0x4] sm:$0xf]
      %v392 = vld [vmem:[#allocation9 + $0x8] sm:$0xf]
      %v393 = vld [vmem:[#allocation9 + $0xc] sm:$0xf]
      %v394 = vld [vmem:[#allocation12] sm:$0x1]
      %v396 = vlaneseq
      %v397 = vshrl.u32 %v396, 7
      %v398 = vsub.s32 0, %v397
      %v399 = vrot.slane %v394, %v398
      %402 = vrot.lane.b32.xlu0 %v387, 96
      %v403 = vpop.permute.xlu0 %402
      %v408 = vunpack.c.l.b16 %v390
      %v409 = vunpack.c.l.b16 %v391
      %v410 = vunpack.c.l.b16 %v392
      %v411 = vunpack.c.l.b16 %v393
      %v412 = vpack.c.b16 %v409, %v408
      %v413 = vpack.c.b16 %v411, %v410
      %v417 = vsel %vm241, %v403, 0
      %419 = vmatprep.subr.bf16.mxu0 0
      %420 = vmatpush1.bf16.msra.mxu0 %v412
      %421 = vmatprep.subr.bf16.mxu0 0
      %422 = vmatpush1.bf16.msra.mxu0 %v413
      %423 = vmatprep.subr.bf16.mxu0 0
      %424 = vmatpush1.bf16.msra.mxu0 0
      %425 = vmatprep.subr.bf16.mxu0 0
      %426 = vmatpush1.bf16.msra.mxu0 0
      %427 = vmatprep.subr.bf16.mxu0 0
      %428 = vmatpush1.bf16.msra.mxu0 0
      %429 = vmatprep.subr.bf16.mxu0 0
      %430 = vmatpush1.bf16.msra.mxu0 0
      %431 = vmatprep.subr.bf16.mxu0 0
      %432 = vmatpush1.bf16.msra.mxu0 0
      %433 = vmatprep.subr.bf16.mxu0 0
      %434 = vmatpush1.bf16.msra.mxu0 0
      %435 = vmatprep.subr.bf16.mxu0 0
      %436 = vmatpush1.bf16.msra.mxu0 0
      %437 = vmatprep.subr.bf16.mxu0 0
      %438 = vmatpush1.bf16.msra.mxu0 0
      %439 = vmatprep.subr.bf16.mxu0 0
      %440 = vmatpush1.bf16.msra.mxu0 0
      %441 = vmatprep.subr.bf16.mxu0 0
      %442 = vmatpush1.bf16.msra.mxu0 0
      %443 = vmatprep.subr.bf16.mxu0 0
      %444 = vmatpush1.bf16.msra.mxu0 0
      %445 = vmatprep.subr.bf16.mxu0 0
      %446 = vmatpush1.bf16.msra.mxu0 0
      %447 = vmatprep.subr.bf16.mxu0 0
      %448 = vmatpush1.bf16.msra.mxu0 0
      %449 = vmatprep.subr.bf16.mxu0 0
      %450 = vmatpush1.bf16.msra.mxu0 0
      %451 = vmatprep.mubr.bf16.mxu0 0
      %452 = vmatmul.mubr.bf16.gmra.mrb[0].mxu0 %v417
      %v453 = vpop.f32.mrb[0].mxu0
      %v454 = vadd.f32 %v399, %v453
      %v455 = vpop.f32.mrb[0].mxu0
      %v456 = vpop.f32.mrb[0].mxu0
      %v457 = vpop.f32.mrb[0].mxu0
      %458 = vdwg.mxu0
      %v459 = vpack.c.bf16 %v389, %v389
      %v460 = vld [vmem:[#allocation11] sm:$0xf]
      %v461 = vld [vmem:[#allocation11 + $0x4] sm:$0xf]
      %v462 = vld [vmem:[#allocation11 + $0x8] sm:$0xf]
      %v463 = vld [vmem:[#allocation11 + $0xc] sm:$0xf]
      %v464 = vld [vmem:[#allocation14] sm:$0x1]
      %v466 = vlaneseq
      %v467 = vshrl.u32 %v466, 7
      %v468 = vsub.s32 0, %v467
      %v469 = vrot.slane %v464, %v468
      %v475 = vunpack.c.l.b16 %v460
      %v476 = vunpack.c.l.b16 %v461
      %v477 = vunpack.c.l.b16 %v462
      %v478 = vunpack.c.l.b16 %v463
      %v479 = vpack.c.b16 %v476, %v475
      %v480 = vpack.c.b16 %v478, %v477
      %v484 = vsel %vm241, %v459, 0
      %486 = vmatprep.subr.bf16.mxu0 0
      %487 = vmatpush1.bf16.msra.mxu0 %v479
      %488 = vmatprep.subr.bf16.mxu0 0
      %489 = vmatpush1.bf16.msra.mxu0 %v480
      %490 = vmatprep.subr.bf16.mxu0 0
      %491 = vmatpush1.bf16.msra.mxu0 0
      %492 = vmatprep.subr.bf16.mxu0 0
      %493 = vmatpush1.bf16.msra.mxu0 0
      %494 = vmatprep.subr.bf16.mxu0 0
      %495 = vmatpush1.bf16.msra.mxu0 0
      %496 = vmatprep.subr.bf16.mxu0 0
      %497 = vmatpush1.bf16.msra.mxu0 0
      %498 = vmatprep.subr.bf16.mxu0 0
      %499 = vmatpush1.bf16.msra.mxu0 0
      %500 = vmatprep.subr.bf16.mxu0 0
      %501 = vmatpush1.bf16.msra.mxu0 0
      %502 = vmatprep.subr.bf16.mxu0 0
      %503 = vmatpush1.bf16.msra.mxu0 0
      %504 = vmatprep.subr.bf16.mxu0 0
      %505 = vmatpush1.bf16.msra.mxu0 0
      %506 = vmatprep.subr.bf16.mxu0 0
      %507 = vmatpush1.bf16.msra.mxu0 0
      %508 = vmatprep.subr.bf16.mxu0 0
      %509 = vmatpush1.bf16.msra.mxu0 0
      %510 = vmatprep.subr.bf16.mxu0 0
      %511 = vmatpush1.bf16.msra.mxu0 0
      %512 = vmatprep.subr.bf16.mxu0 0
      %513 = vmatpush1.bf16.msra.mxu0 0
      %514 = vmatprep.subr.bf16.mxu0 0
      %515 = vmatpush1.bf16.msra.mxu0 0
      %516 = vmatprep.subr.bf16.mxu0 0
      %517 = vmatpush1.bf16.msra.mxu0 0
      %518 = vmatprep.mubr.bf16.mxu0 0
      %519 = vmatmul.mubr.bf16.gmra.mrb[0].mxu0 %v484
      %v520 = vpop.f32.mrb[0].mxu0
      %v521 = vadd.f32 %v469, %v520
      %v522 = vpop.f32.mrb[0].mxu0
      %v523 = vpop.f32.mrb[0].mxu0
      %v524 = vpop.f32.mrb[0].mxu0
      %525 = vdwg.mxu0
      %v526 = vadd.f32 %v454, %v521
      %v527 = vxor.u32 %v526, 2147483648
      %v528 = vmul.f32 %v527, 1.442695
      %v529 = vpow.pop %v528
      %v530 = vadd.f32 %v529, 1.0
      %v531 = vrcp.pop %v530
      %v532 = vmul.f32 1.0, %v531
      %534 = vrot.lane.b32.xlu0 %v521, 64
      %v535 = vpop.permute.xlu0 %534
      %v537 = vmul.f32 %v532, %v535
      %539 = vrot.lane.b32.xlu0 %v537, 64
      %v540 = vpop.permute.xlu0 %539
      %v542 = vadd.f32 %v454, %v540
      %v543 = vtanh.pop %v542
      %v544 = vsub.f32 1.0, %v532
      %546 = vrot.lane.b32.xlu0 %v543, 96
      %v547 = vpop.permute.xlu0 %546
      %v549 = vmul.f32 %v544, %v547
      %551 = vrot.lane.b32.xlu0 %v389, 32
      %v552 = vpop.permute.xlu0 %551
      %v554 = vmul.f32 %v532, %v552
      %v555 = vadd.f32 %v549, %v554
      %557 = vrot.lane.b32.xlu0 %v555, 96
      %v558 = vpop.permute.xlu0 %557
      %s560 = scalar_lea.vmem [#allocation24], 8
      %561 = vst.msk [vmem:[%s560] sm:$0xff] %vm241, %v558
      %v562 = vpack.c.bf16 %v555, %v555
      %v563 = vld [vmem:[%s2] sm:$0xf]
      %v564 = vld [vmem:[%s2 + $0x4] sm:$0xf]
      %v565 = vld [vmem:[%s2 + $0x8] sm:$0xf]
      %v566 = vld [vmem:[%s2 + $0xc] sm:$0xf]
      %v567 = vld [vmem:[%s2 + $0x10] sm:$0xf]
      %v568 = vld [vmem:[%s2 + $0x14] sm:$0xf]
      %v569 = vld [vmem:[%s2 + $0x18] sm:$0xf]
      %v570 = vld [vmem:[%s2 + $0x1c] sm:$0xf]
      %v573 = vunpack.c.l.s4 1966171168
      %v574 = vunpack.c.0.s8 %v573
      %v575 = vlaneseq
      %v576 = vshrl.u32 %v575, 7
      %v577 = vsub.s32 %v574, %v576
      %v578 = vrot.slane %v562, %v577
      %v579 = vcombine.high %v578, %v578
      %v581 = vunpack.c.l.s4 1966171168
      %v582 = vunpack.c.0.s8 %v581
      %v583 = vlaneseq
      %v584 = vshrl.u32 %v583, 7
      %v585 = vsub.s32 %v582, %v584
      %v586 = vrot.slane %v578, %v585
      %v588 = vunpack.c.l.s4 1966171168
      %v589 = vunpack.c.0.s8 %v588
      %v590 = vlaneseq
      %v591 = vshrl.u32 %v590, 7
      %v592 = vsub.s32 %v589, %v591
      %v593 = vrot.slane %v579, %v592
      %v594 = vcombine.high %v586, %v586
      %v595 = vcombine.high %v593, %v593
      %v596 = vunpack.i.l.s16 %v586
      %v597 = vunpack.i.h.s16 %v586
      %v598 = vunpack.i.l.s16 %v593
      %v599 = vunpack.i.h.s16 %v593
      %v600 = vunpack.i.l.s16 %v594
      %v601 = vunpack.i.h.s16 %v594
      %v602 = vunpack.i.l.s16 %v595
      %v603 = vunpack.i.h.s16 %v595
      %v604 = vpack.i.b16 %v596, %v596
      %v605 = vlaneseq
      %v606 = vshrl.u32 %v605, 7
      %v607 = vsub.s32 0, %v606
      %v608 = vrot.slane %v604, %v607
      %609 = vrot.lane.b32.xlu0 %v608, 96
      %v610 = vpop.permute.xlu0 %609
      %v612 = vsel %vm241, %v610, 0
      %v615 = vsel %vm241, %v563, 0
      %617 = vmatprep.subr.bf16.mxu0 0
      %618 = vmatpush1.bf16.xpose.msra.mxu0 %v615
      %619 = vmatprep.subr.bf16.mxu0 0
      %620 = vmatpush1.bf16.xpose.msra.mxu0 0
      %621 = vmatprep.subr.bf16.mxu0 0
      %622 = vmatpush1.bf16.xpose.msra.mxu0 0
      %623 = vmatprep.subr.bf16.mxu0 0
      %624 = vmatpush1.bf16.xpose.msra.mxu0 0
      %625 = vmatprep.subr.bf16.mxu0 0
      %626 = vmatpush1.bf16.xpose.msra.mxu0 0
      %627 = vmatprep.subr.bf16.mxu0 0
      %628 = vmatpush1.bf16.xpose.msra.mxu0 0
      %629 = vmatprep.subr.bf16.mxu0 0
      %630 = vmatpush1.bf16.xpose.msra.mxu0 0
      %631 = vmatprep.subr.bf16.mxu0 0
      %632 = vmatpush1.bf16.xpose.msra.mxu0 0
      %633 = vmatprep.subr.bf16.mxu0 0
      %634 = vmatpush1.bf16.xpose.msra.mxu0 0
      %635 = vmatprep.subr.bf16.mxu0 0
      %636 = vmatpush1.bf16.xpose.msra.mxu0 0
      %637 = vmatprep.subr.bf16.mxu0 0
      %638 = vmatpush1.bf16.xpose.msra.mxu0 0
      %639 = vmatprep.subr.bf16.mxu0 0
      %640 = vmatpush1.bf16.xpose.msra.mxu0 0
      %641 = vmatprep.subr.bf16.mxu0 0
      %642 = vmatpush1.bf16.xpose.msra.mxu0 0
      %643 = vmatprep.subr.bf16.mxu0 0
      %644 = vmatpush1.bf16.xpose.msra.mxu0 0
      %645 = vmatprep.subr.bf16.mxu0 0
      %646 = vmatpush1.bf16.xpose.msra.mxu0 0
      %647 = vmatprep.subr.bf16.mxu0 0
      %648 = vmatpush1.bf16.xpose.msra.mxu0 0
      %649 = vmatprep.mubr.bf16.mxu0 0
      %650 = vmatmul.mubr.bf16.gmra.mrb[0].mxu0 %v612
      %v651 = vpop.f32.mrb[0].mxu0
      %v652 = vadd.f32 0.0, %v651
      %v653 = vpop.f32.mrb[0].mxu0
      %v654 = vpop.f32.mrb[0].mxu0
      %v655 = vpop.f32.mrb[0].mxu0
      %656 = vdwg.mxu0
      %v657 = vpack.i.b16 %v597, %v597
      %v658 = vlaneseq
      %v659 = vshrl.u32 %v658, 7
      %v660 = vsub.s32 0, %v659
      %v661 = vrot.slane %v657, %v660
      %662 = vrot.lane.b32.xlu0 %v661, 96
      %v663 = vpop.permute.xlu0 %662
      %v665 = vsel %vm241, %v663, 0
      %v668 = vsel %vm241, %v564, 0
      %670 = vmatprep.subr.bf16.mxu0 0
      %671 = vmatpush1.bf16.xpose.msra.mxu0 %v668
      %672 = vmatprep.subr.bf16.mxu0 0
      %673 = vmatpush1.bf16.xpose.msra.mxu0 0
      %674 = vmatprep.subr.bf16.mxu0 0
      %675 = vmatpush1.bf16.xpose.msra.mxu0 0
      %676 = vmatprep.subr.bf16.mxu0 0
      %677 = vmatpush1.bf16.xpose.msra.mxu0 0
      %678 = vmatprep.subr.bf16.mxu0 0
      %679 = vmatpush1.bf16.xpose.msra.mxu0 0
      %680 = vmatprep.subr.bf16.mxu0 0
      %681 = vmatpush1.bf16.xpose.msra.mxu0 0
      %682 = vmatprep.subr.bf16.mxu0 0
      %683 = vmatpush1.bf16.xpose.msra.mxu0 0
      %684 = vmatprep.subr.bf16.mxu0 0
      %685 = vmatpush1.bf16.xpose.msra.mxu0 0
      %686 = vmatprep.subr.bf16.mxu0 0
      %687 = vmatpush1.bf16.xpose.msra.mxu0 0
      %688 = vmatprep.subr.bf16.mxu0 0
      %689 = vmatpush1.bf16.xpose.msra.mxu0 0
      %690 = vmatprep.subr.bf16.mxu0 0
      %691 = vmatpush1.bf16.xpose.msra.mxu0 0
      %692 = vmatprep.subr.bf16.mxu0 0
      %693 = vmatpush1.bf16.xpose.msra.mxu0 0
      %694 = vmatprep.subr.bf16.mxu0 0
      %695 = vmatpush1.bf16.xpose.msra.mxu0 0
      %696 = vmatprep.subr.bf16.mxu0 0
      %697 = vmatpush1.bf16.xpose.msra.mxu0 0
      %698 = vmatprep.subr.bf16.mxu0 0
      %699 = vmatpush1.bf16.xpose.msra.mxu0 0
      %700 = vmatprep.subr.bf16.mxu0 0
      %701 = vmatpush1.bf16.xpose.msra.mxu0 0
      %702 = vmatprep.mubr.bf16.mxu0 0
      %703 = vmatmul.mubr.bf16.gmra.mrb[0].mxu0 %v665
      %v704 = vpop.f32.mrb[0].mxu0
      %v705 = vadd.f32 0.0, %v704
      %v706 = vpop.f32.mrb[0].mxu0
      %v707 = vpop.f32.mrb[0].mxu0
      %v708 = vpop.f32.mrb[0].mxu0
      %709 = vdwg.mxu0
      %v710 = vpack.i.b16 %v598, %v598
      %v711 = vlaneseq
      %v712 = vshrl.u32 %v711, 7
      %v713 = vsub.s32 0, %v712
      %v714 = vrot.slane %v710, %v713
      %715 = vrot.lane.b32.xlu0 %v714, 96
      %v716 = vpop.permute.xlu0 %715
      %v718 = vsel %vm241, %v716, 0
      %v721 = vsel %vm241, %v565, 0
      %723 = vmatprep.subr.bf16.mxu0 0
      %724 = vmatpush1.bf16.xpose.msra.mxu0 %v721
      %725 = vmatprep.subr.bf16.mxu0 0
      %726 = vmatpush1.bf16.xpose.msra.mxu0 0
      %727 = vmatprep.subr.bf16.mxu0 0
      %728 = vmatpush1.bf16.xpose.msra.mxu0 0
      %729 = vmatprep.subr.bf16.mxu0 0
      %730 = vmatpush1.bf16.xpose.msra.mxu0 0
      %731 = vmatprep.subr.bf16.mxu0 0
      %732 = vmatpush1.bf16.xpose.msra.mxu0 0
      %733 = vmatprep.subr.bf16.mxu0 0
      %734 = vmatpush1.bf16.xpose.msra.mxu0 0
      %735 = vmatprep.subr.bf16.mxu0 0
      %736 = vmatpush1.bf16.xpose.msra.mxu0 0
      %737 = vmatprep.subr.bf16.mxu0 0
      %738 = vmatpush1.bf16.xpose.msra.mxu0 0
      %739 = vmatprep.subr.bf16.mxu0 0
      %740 = vmatpush1.bf16.xpose.msra.mxu0 0
      %741 = vmatprep.subr.bf16.mxu0 0
      %742 = vmatpush1.bf16.xpose.msra.mxu0 0
      %743 = vmatprep.subr.bf16.mxu0 0
      %744 = vmatpush1.bf16.xpose.msra.mxu0 0
      %745 = vmatprep.subr.bf16.mxu0 0
      %746 = vmatpush1.bf16.xpose.msra.mxu0 0
      %747 = vmatprep.subr.bf16.mxu0 0
      %748 = vmatpush1.bf16.xpose.msra.mxu0 0
      %749 = vmatprep.subr.bf16.mxu0 0
      %750 = vmatpush1.bf16.xpose.msra.mxu0 0
      %751 = vmatprep.subr.bf16.mxu0 0
      %752 = vmatpush1.bf16.xpose.msra.mxu0 0
      %753 = vmatprep.subr.bf16.mxu0 0
      %754 = vmatpush1.bf16.xpose.msra.mxu0 0
      %755 = vmatprep.mubr.bf16.mxu0 0
      %756 = vmatmul.mubr.bf16.gmra.mrb[0].mxu0 %v718
      %v757 = vpop.f32.mrb[0].mxu0
      %v758 = vadd.f32 0.0, %v757
      %v759 = vpop.f32.mrb[0].mxu0
      %v760 = vpop.f32.mrb[0].mxu0
      %v761 = vpop.f32.mrb[0].mxu0
      %762 = vdwg.mxu0
      %v763 = vpack.i.b16 %v599, %v599
      %v764 = vlaneseq
      %v765 = vshrl.u32 %v764, 7
      %v766 = vsub.s32 0, %v765
      %v767 = vrot.slane %v763, %v766
      %768 = vrot.lane.b32.xlu0 %v767, 96
      %v769 = vpop.permute.xlu0 %768
      %v771 = vsel %vm241, %v769, 0
      %v774 = vsel %vm241, %v566, 0
      %776 = vmatprep.subr.bf16.mxu0 0
      %777 = vmatpush1.bf16.xpose.msra.mxu0 %v774
      %778 = vmatprep.subr.bf16.mxu0 0
      %779 = vmatpush1.bf16.xpose.msra.mxu0 0
      %780 = vmatprep.subr.bf16.mxu0 0
      %781 = vmatpush1.bf16.xpose.msra.mxu0 0
      %782 = vmatprep.subr.bf16.mxu0 0
      %783 = vmatpush1.bf16.xpose.msra.mxu0 0
      %784 = vmatprep.subr.bf16.mxu0 0
      %785 = vmatpush1.bf16.xpose.msra.mxu0 0
      %786 = vmatprep.subr.bf16.mxu0 0
      %787 = vmatpush1.bf16.xpose.msra.mxu0 0
      %788 = vmatprep.subr.bf16.mxu0 0
      %789 = vmatpush1.bf16.xpose.msra.mxu0 0
      %790 = vmatprep.subr.bf16.mxu0 0
      %791 = vmatpush1.bf16.xpose.msra.mxu0 0
      %792 = vmatprep.subr.bf16.mxu0 0
      %793 = vmatpush1.bf16.xpose.msra.mxu0 0
      %794 = vmatprep.subr.bf16.mxu0 0
      %795 = vmatpush1.bf16.xpose.msra.mxu0 0
      %796 = vmatprep.subr.bf16.mxu0 0
      %797 = vmatpush1.bf16.xpose.msra.mxu0 0
      %798 = vmatprep.subr.bf16.mxu0 0
      %799 = vmatpush1.bf16.xpose.msra.mxu0 0
      %800 = vmatprep.subr.bf16.mxu0 0
      %801 = vmatpush1.bf16.xpose.msra.mxu0 0
      %802 = vmatprep.subr.bf16.mxu0 0
      %803 = vmatpush1.bf16.xpose.msra.mxu0 0
      %804 = vmatprep.subr.bf16.mxu0 0
      %805 = vmatpush1.bf16.xpose.msra.mxu0 0
      %806 = vmatprep.subr.bf16.mxu0 0
      %807 = vmatpush1.bf16.xpose.msra.mxu0 0
      %808 = vmatprep.mubr.bf16.mxu0 0
      %809 = vmatmul.mubr.bf16.gmra.mrb[0].mxu0 %v771
      %v810 = vpop.f32.mrb[0].mxu0
      %v811 = vadd.f32 0.0, %v810
      %v812 = vpop.f32.mrb[0].mxu0
      %v813 = vpop.f32.mrb[0].mxu0
      %v814 = vpop.f32.mrb[0].mxu0
      %815 = vdwg.mxu0
      %v816 = vpack.i.b16 %v600, %v600
      %v817 = vlaneseq
      %v818 = vshrl.u32 %v817, 7
      %v819 = vsub.s32 0, %v818
      %v820 = vrot.slane %v816, %v819
      %821 = vrot.lane.b32.xlu0 %v820, 96
      %v822 = vpop.permute.xlu0 %821
      %v824 = vsel %vm241, %v822, 0
      %v827 = vsel %vm241, %v567, 0
      %829 = vmatprep.subr.bf16.mxu0 0
      %830 = vmatpush1.bf16.xpose.msra.mxu0 %v827
      %831 = vmatprep.subr.bf16.mxu0 0
      %832 = vmatpush1.bf16.xpose.msra.mxu0 0
      %833 = vmatprep.subr.bf16.mxu0 0
      %834 = vmatpush1.bf16.xpose.msra.mxu0 0
      %835 = vmatprep.subr.bf16.mxu0 0
      %836 = vmatpush1.bf16.xpose.msra.mxu0 0
      %837 = vmatprep.subr.bf16.mxu0 0
      %838 = vmatpush1.bf16.xpose.msra.mxu0 0
      %839 = vmatprep.subr.bf16.mxu0 0
      %840 = vmatpush1.bf16.xpose.msra.mxu0 0
      %841 = vmatprep.subr.bf16.mxu0 0
      %842 = vmatpush1.bf16.xpose.msra.mxu0 0
      %843 = vmatprep.subr.bf16.mxu0 0
      %844 = vmatpush1.bf16.xpose.msra.mxu0 0
      %845 = vmatprep.subr.bf16.mxu0 0
      %846 = vmatpush1.bf16.xpose.msra.mxu0 0
      %847 = vmatprep.subr.bf16.mxu0 0
      %848 = vmatpush1.bf16.xpose.msra.mxu0 0
      %849 = vmatprep.subr.bf16.mxu0 0
      %850 = vmatpush1.bf16.xpose.msra.mxu0 0
      %851 = vmatprep.subr.bf16.mxu0 0
      %852 = vmatpush1.bf16.xpose.msra.mxu0 0
      %853 = vmatprep.subr.bf16.mxu0 0
      %854 = vmatpush1.bf16.xpose.msra.mxu0 0
      %855 = vmatprep.subr.bf16.mxu0 0
      %856 = vmatpush1.bf16.xpose.msra.mxu0 0
      %857 = vmatprep.subr.bf16.mxu0 0
      %858 = vmatpush1.bf16.xpose.msra.mxu0 0
      %859 = vmatprep.subr.bf16.mxu0 0
      %860 = vmatpush1.bf16.xpose.msra.mxu0 0
      %861 = vmatprep.mubr.bf16.mxu0 0
      %862 = vmatmul.mubr.bf16.gmra.mrb[0].mxu0 %v824
      %v863 = vpop.f32.mrb[0].mxu0
      %v864 = vadd.f32 0.0, %v863
      %v865 = vpop.f32.mrb[0].mxu0
      %v866 = vpop.f32.mrb[0].mxu0
      %v867 = vpop.f32.mrb[0].mxu0
      %868 = vdwg.mxu0
      %v869 = vpack.i.b16 %v601, %v601
      %v870 = vlaneseq
      %v871 = vshrl.u32 %v870, 7
      %v872 = vsub.s32 0, %v871
      %v873 = vrot.slane %v869, %v872
      %874 = vrot.lane.b32.xlu0 %v873, 96
      %v875 = vpop.permute.xlu0 %874
      %v877 = vsel %vm241, %v875, 0
      %v880 = vsel %vm241, %v568, 0
      %882 = vmatprep.subr.bf16.mxu0 0
      %883 = vmatpush1.bf16.xpose.msra.mxu0 %v880
      %884 = vmatprep.subr.bf16.mxu0 0
      %885 = vmatpush1.bf16.xpose.msra.mxu0 0
      %886 = vmatprep.subr.bf16.mxu0 0
      %887 = vmatpush1.bf16.xpose.msra.mxu0 0
      %888 = vmatprep.subr.bf16.mxu0 0
      %889 = vmatpush1.bf16.xpose.msra.mxu0 0
      %890 = vmatprep.subr.bf16.mxu0 0
      %891 = vmatpush1.bf16.xpose.msra.mxu0 0
      %892 = vmatprep.subr.bf16.mxu0 0
      %893 = vmatpush1.bf16.xpose.msra.mxu0 0
      %894 = vmatprep.subr.bf16.mxu0 0
      %895 = vmatpush1.bf16.xpose.msra.mxu0 0
      %896 = vmatprep.subr.bf16.mxu0 0
      %897 = vmatpush1.bf16.xpose.msra.mxu0 0
      %898 = vmatprep.subr.bf16.mxu0 0
      %899 = vmatpush1.bf16.xpose.msra.mxu0 0
      %900 = vmatprep.subr.bf16.mxu0 0
      %901 = vmatpush1.bf16.xpose.msra.mxu0 0
      %902 = vmatprep.subr.bf16.mxu0 0
      %903 = vmatpush1.bf16.xpose.msra.mxu0 0
      %904 = vmatprep.subr.bf16.mxu0 0
      %905 = vmatpush1.bf16.xpose.msra.mxu0 0
      %906 = vmatprep.subr.bf16.mxu0 0
      %907 = vmatpush1.bf16.xpose.msra.mxu0 0
      %908 = vmatprep.subr.bf16.mxu0 0
      %909 = vmatpush1.bf16.xpose.msra.mxu0 0
      %910 = vmatprep.subr.bf16.mxu0 0
      %911 = vmatpush1.bf16.xpose.msra.mxu0 0
      %912 = vmatprep.subr.bf16.mxu0 0
      %913 = vmatpush1.bf16.xpose.msra.mxu0 0
      %914 = vmatprep.mubr.bf16.mxu0 0
      %915 = vmatmul.mubr.bf16.gmra.mrb[0].mxu0 %v877
      %v916 = vpop.f32.mrb[0].mxu0
      %v917 = vadd.f32 0.0, %v916
      %v918 = vpop.f32.mrb[0].mxu0
      %v919 = vpop.f32.mrb[0].mxu0
      %v920 = vpop.f32.mrb[0].mxu0
      %921 = vdwg.mxu0
      %v922 = vpack.i.b16 %v602, %v602
      %v923 = vlaneseq
      %v924 = vshrl.u32 %v923, 7
      %v925 = vsub.s32 0, %v924
      %v926 = vrot.slane %v922, %v925
      %927 = vrot.lane.b32.xlu0 %v926, 96
      %v928 = vpop.permute.xlu0 %927
      %v930 = vsel %vm241, %v928, 0
      %v933 = vsel %vm241, %v569, 0
      %935 = vmatprep.subr.bf16.mxu0 0
      %936 = vmatpush1.bf16.xpose.msra.mxu0 %v933
      %937 = vmatprep.subr.bf16.mxu0 0
      %938 = vmatpush1.bf16.xpose.msra.mxu0 0
      %939 = vmatprep.subr.bf16.mxu0 0
      %940 = vmatpush1.bf16.xpose.msra.mxu0 0
      %941 = vmatprep.subr.bf16.mxu0 0
      %942 = vmatpush1.bf16.xpose.msra.mxu0 0
      %943 = vmatprep.subr.bf16.mxu0 0
      %944 = vmatpush1.bf16.xpose.msra.mxu0 0
      %945 = vmatprep.subr.bf16.mxu0 0
      %946 = vmatpush1.bf16.xpose.msra.mxu0 0
      %947 = vmatprep.subr.bf16.mxu0 0
      %948 = vmatpush1.bf16.xpose.msra.mxu0 0
      %949 = vmatprep.subr.bf16.mxu0 0
      %950 = vmatpush1.bf16.xpose.msra.mxu0 0
      %951 = vmatprep.subr.bf16.mxu0 0
      %952 = vmatpush1.bf16.xpose.msra.mxu0 0
      %953 = vmatprep.subr.bf16.mxu0 0
      %954 = vmatpush1.bf16.xpose.msra.mxu0 0
      %955 = vmatprep.subr.bf16.mxu0 0
      %956 = vmatpush1.bf16.xpose.msra.mxu0 0
      %957 = vmatprep.subr.bf16.mxu0 0
      %958 = vmatpush1.bf16.xpose.msra.mxu0 0
      %959 = vmatprep.subr.bf16.mxu0 0
      %960 = vmatpush1.bf16.xpose.msra.mxu0 0
      %961 = vmatprep.subr.bf16.mxu0 0
      %962 = vmatpush1.bf16.xpose.msra.mxu0 0
      %963 = vmatprep.subr.bf16.mxu0 0
      %964 = vmatpush1.bf16.xpose.msra.mxu0 0
      %965 = vmatprep.subr.bf16.mxu0 0
      %966 = vmatpush1.bf16.xpose.msra.mxu0 0
      %967 = vmatprep.mubr.bf16.mxu0 0
      %968 = vmatmul.mubr.bf16.gmra.mrb[0].mxu0 %v930
      %v969 = vpop.f32.mrb[0].mxu0
      %v970 = vadd.f32 0.0, %v969
      %v971 = vpop.f32.mrb[0].mxu0
      %v972 = vpop.f32.mrb[0].mxu0
      %v973 = vpop.f32.mrb[0].mxu0
      %974 = vdwg.mxu0
      %v975 = vpack.i.b16 %v603, %v603
      %v976 = vlaneseq
      %v977 = vshrl.u32 %v976, 7
      %v978 = vsub.s32 0, %v977
      %v979 = vrot.slane %v975, %v978
      %980 = vrot.lane.b32.xlu0 %v979, 96
      %v981 = vpop.permute.xlu0 %980
      %v983 = vsel %vm241, %v981, 0
      %v986 = vsel %vm241, %v570, 0
      %988 = vmatprep.subr.bf16.mxu0 0
      %989 = vmatpush1.bf16.xpose.msra.mxu0 %v986
      %990 = vmatprep.subr.bf16.mxu0 0
      %991 = vmatpush1.bf16.xpose.msra.mxu0 0
      %992 = vmatprep.subr.bf16.mxu0 0
      %993 = vmatpush1.bf16.xpose.msra.mxu0 0
      %994 = vmatprep.subr.bf16.mxu0 0
      %995 = vmatpush1.bf16.xpose.msra.mxu0 0
      %996 = vmatprep.subr.bf16.mxu0 0
      %997 = vmatpush1.bf16.xpose.msra.mxu0 0
      %998 = vmatprep.subr.bf16.mxu0 0
      %999 = vmatpush1.bf16.xpose.msra.mxu0 0
      %1000 = vmatprep.subr.bf16.mxu0 0
      %1001 = vmatpush1.bf16.xpose.msra.mxu0 0
      %1002 = vmatprep.subr.bf16.mxu0 0
      %1003 = vmatpush1.bf16.xpose.msra.mxu0 0
      %1004 = vmatprep.subr.bf16.mxu0 0
      %1005 = vmatpush1.bf16.xpose.msra.mxu0 0
      %1006 = vmatprep.subr.bf16.mxu0 0
      %1007 = vmatpush1.bf16.xpose.msra.mxu0 0
      %1008 = vmatprep.subr.bf16.mxu0 0
      %1009 = vmatpush1.bf16.xpose.msra.mxu0 0
      %1010 = vmatprep.subr.bf16.mxu0 0
      %1011 = vmatpush1.bf16.xpose.msra.mxu0 0
      %1012 = vmatprep.subr.bf16.mxu0 0
      %1013 = vmatpush1.bf16.xpose.msra.mxu0 0
      %1014 = vmatprep.subr.bf16.mxu0 0
      %1015 = vmatpush1.bf16.xpose.msra.mxu0 0
      %1016 = vmatprep.subr.bf16.mxu0 0
      %1017 = vmatpush1.bf16.xpose.msra.mxu0 0
      %1018 = vmatprep.subr.bf16.mxu0 0
      %1019 = vmatpush1.bf16.xpose.msra.mxu0 0
      %1020 = vmatprep.mubr.bf16.mxu0 0
      %1021 = vmatmul.mubr.bf16.gmra.mrb[0].mxu0 %v983
      %v1022 = vpop.f32.mrb[0].mxu0
      %v1023 = vadd.f32 0.0, %v1022
      %v1024 = vpop.f32.mrb[0].mxu0
      %v1025 = vpop.f32.mrb[0].mxu0
      %v1026 = vpop.f32.mrb[0].mxu0
      %1027 = vdwg.mxu0
      %v1028 = vld [vmem:[#allocation6] sm:$0xff]
      %v1030 = vrot.slane %v1028, 1
      %v1031 = vrot.slane %v1028, 2
      %v1032 = vrot.slane %v1028, 3
      %v1033 = vrot.slane %v1028, 4
      %v1034 = vrot.slane %v1028, 5
      %v1035 = vrot.slane %v1028, 6
      %v1036 = vrot.slane %v1028, 7
      %v1045 = vadd.f32 %v652, %v1028
      %v1046 = vadd.f32 %v705, %v1030
      %v1047 = vadd.f32 %v758, %v1031
      %v1048 = vadd.f32 %v811, %v1032
      %v1049 = vadd.f32 %v864, %v1033
      %v1050 = vadd.f32 %v917, %v1034
      %v1051 = vadd.f32 %v970, %v1035
      %v1052 = vadd.f32 %v1023, %v1036
      %v1061 = vrot.slane %v1046, 7
      %vm1062 = vcmask 1041409
      %v1063 = vsel %vm1062, %v1061, %v1045
      %v1064 = vrot.slane %v1047, 6
      %vm1065 = vcmask 1042434
      %v1066 = vsel %vm1065, %v1064, %v1063
      %v1067 = vrot.slane %v1048, 5
      %vm1068 = vcmask 1043459
      %v1069 = vsel %vm1068, %v1067, %v1066
      %v1070 = vrot.slane %v1049, 4
      %vm1071 = vcmask 1044484
      %v1072 = vsel %vm1071, %v1070, %v1069
      %v1073 = vrot.slane %v1050, 3
      %vm1074 = vcmask 1045509
      %v1075 = vsel %vm1074, %v1073, %v1072
      %v1076 = vrot.slane %v1051, 2
      %vm1077 = vcmask 1046534
      %v1078 = vsel %vm1077, %v1076, %v1075
      %v1079 = vrot.slane %v1052, 1
      %vm1080 = vcmask 1047559
      %v1081 = vsel %vm1080, %v1079, %v1078
      %vm1083 = vcmask 64512
      %v1084 = vsel %vm1083, %v1081, -inf
      %1085 = vmax.xlane.f32.xlu0 %v1084
      %v1086 = vpop.xlane.xlu0 %1085
      %v1088 = vrot.slane %v1086, 1
      %v1089 = vrot.slane %v1086, 2
      %v1090 = vrot.slane %v1086, 3
      %v1091 = vrot.slane %v1086, 4
      %v1092 = vrot.slane %v1086, 5
      %v1093 = vrot.slane %v1086, 6
      %v1094 = vrot.slane %v1086, 7
      %v1103 = vsub.f32 %v1045, %v1086
      %v1104 = vsub.f32 %v1046, %v1088
      %v1105 = vsub.f32 %v1047, %v1089
      %v1106 = vsub.f32 %v1048, %v1090
      %v1107 = vsub.f32 %v1049, %v1091
      %v1108 = vsub.f32 %v1050, %v1092
      %v1109 = vsub.f32 %v1051, %v1093
      %v1110 = vsub.f32 %v1052, %v1094
      %v1111 = vmul.f32 %v1103, 1.442695
      %v1112 = vpow.pop %v1111
      %v1113 = vmul.f32 %v1104, 1.442695
      %v1114 = vpow.pop %v1113
      %v1115 = vmul.f32 %v1105, 1.442695
      %v1116 = vpow.pop %v1115
      %v1117 = vmul.f32 %v1106, 1.442695
      %v1118 = vpow.pop %v1117
      %v1119 = vmul.f32 %v1107, 1.442695
      %v1120 = vpow.pop %v1119
      %v1121 = vmul.f32 %v1108, 1.442695
      %v1122 = vpow.pop %v1121
      %v1123 = vmul.f32 %v1109, 1.442695
      %v1124 = vpow.pop %v1123
      %v1125 = vmul.f32 %v1110, 1.442695
      %v1126 = vpow.pop %v1125
      %v1135 = vrot.slane %v1114, 7
      %v1136 = vsel %vm1062, %v1135, %v1112
      %v1137 = vrot.slane %v1116, 6
      %v1138 = vsel %vm1065, %v1137, %v1136
      %v1139 = vrot.slane %v1118, 5
      %v1140 = vsel %vm1068, %v1139, %v1138
      %v1141 = vrot.slane %v1120, 4
      %v1142 = vsel %vm1071, %v1141, %v1140
      %v1143 = vrot.slane %v1122, 3
      %v1144 = vsel %vm1074, %v1143, %v1142
      %v1145 = vrot.slane %v1124, 2
      %v1146 = vsel %vm1077, %v1145, %v1144
      %v1147 = vrot.slane %v1126, 1
      %v1148 = vsel %vm1080, %v1147, %v1146
      %v1150 = vsel %vm1083, %v1148, 0.0
      %1151 = vadd.xlane.f32.xlu0 %v1150
      %v1152 = vpop.xlane.xlu0 %1151
      %v1153 = vrcp.pop %v1152
      %v1154 = vpack.c.bf16 %v1112, %v1112
      %v1155 = vpack.c.bf16 %v1114, %v1114
      %v1156 = vpack.c.bf16 %v1116, %v1116
      %v1157 = vpack.c.bf16 %v1118, %v1118
      %v1158 = vpack.c.bf16 %v1120, %v1120
      %v1159 = vpack.c.bf16 %v1122, %v1122
      %v1160 = vpack.c.bf16 %v1124, %v1124
      %v1161 = vpack.c.bf16 %v1126, %v1126
      %v1163 = vsel %vm1083, %v1154, 0
      %vm1165 = vcmask 1043456
      %v1166 = vsel %vm1165, %v563, 0
      %1168 = vmatprep.subr.bf16.mxu0 0
      %1169 = vmatpush1.bf16.msra.mxu0 %v1166
      %1170 = vmatprep.subr.bf16.mxu0 0
      %1171 = vmatpush1.bf16.msra.mxu0 0
      %1172 = vmatprep.subr.bf16.mxu0 0
      %1173 = vmatpush1.bf16.msra.mxu0 0
      %1174 = vmatprep.subr.bf16.mxu0 0
      %1175 = vmatpush1.bf16.msra.mxu0 0
      %1176 = vmatprep.subr.bf16.mxu0 0
      %1177 = vmatpush1.bf16.msra.mxu0 0
      %1178 = vmatprep.subr.bf16.mxu0 0
      %1179 = vmatpush1.bf16.msra.mxu0 0
      %1180 = vmatprep.subr.bf16.mxu0 0
      %1181 = vmatpush1.bf16.msra.mxu0 0
      %1182 = vmatprep.subr.bf16.mxu0 0
      %1183 = vmatpush1.bf16.msra.mxu0 0
      %1184 = vmatprep.subr.bf16.mxu0 0
      %1185 = vmatpush1.bf16.msra.mxu0 0
      %1186 = vmatprep.subr.bf16.mxu0 0
      %1187 = vmatpush1.bf16.msra.mxu0 0
      %1188 = vmatprep.subr.bf16.mxu0 0
      %1189 = vmatpush1.bf16.msra.mxu0 0
      %1190 = vmatprep.subr.bf16.mxu0 0
      %1191 = vmatpush1.bf16.msra.mxu0 0
      %1192 = vmatprep.subr.bf16.mxu0 0
      %1193 = vmatpush1.bf16.msra.mxu0 0
      %1194 = vmatprep.subr.bf16.mxu0 0
      %1195 = vmatpush1.bf16.msra.mxu0 0
      %1196 = vmatprep.subr.bf16.mxu0 0
      %1197 = vmatpush1.bf16.msra.mxu0 0
      %1198 = vmatprep.subr.bf16.mxu0 0
      %1199 = vmatpush1.bf16.msra.mxu0 0
      %1200 = vmatprep.mubr.bf16.mxu0 0
      %1201 = vmatmul.mubr.bf16.gmra.mrb[0].mxu0 %v1163
      %v1202 = vpop.f32.mrb[0].mxu0
      %v1203 = vadd.f32 0.0, %v1202
      %v1204 = vpop.f32.mrb[0].mxu0
      %v1205 = vpop.f32.mrb[0].mxu0
      %v1206 = vpop.f32.mrb[0].mxu0
      %1207 = vdwg.mxu0
      %v1209 = vsel %vm1083, %v1155, 0
      %v1211 = vsel %vm1165, %v564, 0
      %1213 = vmatprep.subr.bf16.mxu0 0
      %1214 = vmatpush1.bf16.msra.mxu0 %v1211
      %1215 = vmatprep.subr.bf16.mxu0 0
      %1216 = vmatpush1.bf16.msra.mxu0 0
      %1217 = vmatprep.subr.bf16.mxu0 0
      %1218 = vmatpush1.bf16.msra.mxu0 0
      %1219 = vmatprep.subr.bf16.mxu0 0
      %1220 = vmatpush1.bf16.msra.mxu0 0
      %1221 = vmatprep.subr.bf16.mxu0 0
      %1222 = vmatpush1.bf16.msra.mxu0 0
      %1223 = vmatprep.subr.bf16.mxu0 0
      %1224 = vmatpush1.bf16.msra.mxu0 0
      %1225 = vmatprep.subr.bf16.mxu0 0
      %1226 = vmatpush1.bf16.msra.mxu0 0
      %1227 = vmatprep.subr.bf16.mxu0 0
      %1228 = vmatpush1.bf16.msra.mxu0 0
      %1229 = vmatprep.subr.bf16.mxu0 0
      %1230 = vmatpush1.bf16.msra.mxu0 0
      %1231 = vmatprep.subr.bf16.mxu0 0
      %1232 = vmatpush1.bf16.msra.mxu0 0
      %1233 = vmatprep.subr.bf16.mxu0 0
      %1234 = vmatpush1.bf16.msra.mxu0 0
      %1235 = vmatprep.subr.bf16.mxu0 0
      %1236 = vmatpush1.bf16.msra.mxu0 0
      %1237 = vmatprep.subr.bf16.mxu0 0
      %1238 = vmatpush1.bf16.msra.mxu0 0
      %1239 = vmatprep.subr.bf16.mxu0 0
      %1240 = vmatpush1.bf16.msra.mxu0 0
      %1241 = vmatprep.subr.bf16.mxu0 0
      %1242 = vmatpush1.bf16.msra.mxu0 0
      %1243 = vmatprep.subr.bf16.mxu0 0
      %1244 = vmatpush1.bf16.msra.mxu0 0
      %1245 = vmatprep.mubr.bf16.mxu0 0
      %1246 = vmatmul.mubr.bf16.gmra.mrb[0].mxu0 %v1209
      %v1247 = vpop.f32.mrb[0].mxu0
      %v1248 = vadd.f32 0.0, %v1247
      %v1249 = vpop.f32.mrb[0].mxu0
      %v1250 = vpop.f32.mrb[0].mxu0
      %v1251 = vpop.f32.mrb[0].mxu0
      %1252 = vdwg.mxu0
      %v1254 = vsel %vm1083, %v1156, 0
      %v1256 = vsel %vm1165, %v565, 0
      %1258 = vmatprep.subr.bf16.mxu0 0
      %1259 = vmatpush1.bf16.msra.mxu0 %v1256
      %1260 = vmatprep.subr.bf16.mxu0 0
      %1261 = vmatpush1.bf16.msra.mxu0 0
      %1262 = vmatprep.subr.bf16.mxu0 0
      %1263 = vmatpush1.bf16.msra.mxu0 0
      %1264 = vmatprep.subr.bf16.mxu0 0
      %1265 = vmatpush1.bf16.msra.mxu0 0
      %1266 = vmatprep.subr.bf16.mxu0 0
      %1267 = vmatpush1.bf16.msra.mxu0 0
      %1268 = vmatprep.subr.bf16.mxu0 0
      %1269 = vmatpush1.bf16.msra.mxu0 0
      %1270 = vmatprep.subr.bf16.mxu0 0
      %1271 = vmatpush1.bf16.msra.mxu0 0
      %1272 = vmatprep.subr.bf16.mxu0 0
      %1273 = vmatpush1.bf16.msra.mxu0 0
      %1274 = vmatprep.subr.bf16.mxu0 0
      %1275 = vmatpush1.bf16.msra.mxu0 0
      %1276 = vmatprep.subr.bf16.mxu0 0
      %1277 = vmatpush1.bf16.msra.mxu0 0
      %1278 = vmatprep.subr.bf16.mxu0 0
      %1279 = vmatpush1.bf16.msra.mxu0 0
      %1280 = vmatprep.subr.bf16.mxu0 0
      %1281 = vmatpush1.bf16.msra.mxu0 0
      %1282 = vmatprep.subr.bf16.mxu0 0
      %1283 = vmatpush1.bf16.msra.mxu0 0
      %1284 = vmatprep.subr.bf16.mxu0 0
      %1285 = vmatpush1.bf16.msra.mxu0 0
      %1286 = vmatprep.subr.bf16.mxu0 0
      %1287 = vmatpush1.bf16.msra.mxu0 0
      %1288 = vmatprep.subr.bf16.mxu0 0
      %1289 = vmatpush1.bf16.msra.mxu0 0
      %1290 = vmatprep.mubr.bf16.mxu0 0
      %1291 = vmatmul.mubr.bf16.gmra.mrb[0].mxu0 %v1254
      %v1292 = vpop.f32.mrb[0].mxu0
      %v1293 = vadd.f32 0.0, %v1292
      %v1294 = vpop.f32.mrb[0].mxu0
      %v1295 = vpop.f32.mrb[0].mxu0
      %v1296 = vpop.f32.mrb[0].mxu0
      %1297 = vdwg.mxu0
      %v1299 = vsel %vm1083, %v1157, 0
      %v1301 = vsel %vm1165, %v566, 0
      %1303 = vmatprep.subr.bf16.mxu0 0
      %1304 = vmatpush1.bf16.msra.mxu0 %v1301
      %1305 = vmatprep.subr.bf16.mxu0 0
      %1306 = vmatpush1.bf16.msra.mxu0 0
      %1307 = vmatprep.subr.bf16.mxu0 0
      %1308 = vmatpush1.bf16.msra.mxu0 0
      %1309 = vmatprep.subr.bf16.mxu0 0
      %1310 = vmatpush1.bf16.msra.mxu0 0
      %1311 = vmatprep.subr.bf16.mxu0 0
      %1312 = vmatpush1.bf16.msra.mxu0 0
      %1313 = vmatprep.subr.bf16.mxu0 0
      %1314 = vmatpush1.bf16.msra.mxu0 0
      %1315 = vmatprep.subr.bf16.mxu0 0
      %1316 = vmatpush1.bf16.msra.mxu0 0
      %1317 = vmatprep.subr.bf16.mxu0 0
      %1318 = vmatpush1.bf16.msra.mxu0 0
      %1319 = vmatprep.subr.bf16.mxu0 0
      %1320 = vmatpush1.bf16.msra.mxu0 0
      %1321 = vmatprep.subr.bf16.mxu0 0
      %1322 = vmatpush1.bf16.msra.mxu0 0
      %1323 = vmatprep.subr.bf16.mxu0 0
      %1324 = vmatpush1.bf16.msra.mxu0 0
      %1325 = vmatprep.subr.bf16.mxu0 0
      %1326 = vmatpush1.bf16.msra.mxu0 0
      %1327 = vmatprep.subr.bf16.mxu0 0
      %1328 = vmatpush1.bf16.msra.mxu0 0
      %1329 = vmatprep.subr.bf16.mxu0 0
      %1330 = vmatpush1.bf16.msra.mxu0 0
      %1331 = vmatprep.subr.bf16.mxu0 0
      %1332 = vmatpush1.bf16.msra.mxu0 0
      %1333 = vmatprep.subr.bf16.mxu0 0
      %1334 = vmatpush1.bf16.msra.mxu0 0
      %1335 = vmatprep.mubr.bf16.mxu0 0
      %1336 = vmatmul.mubr.bf16.gmra.mrb[0].mxu0 %v1299
      %v1337 = vpop.f32.mrb[0].mxu0
      %v1338 = vadd.f32 0.0, %v1337
      %v1339 = vpop.f32.mrb[0].mxu0
      %v1340 = vpop.f32.mrb[0].mxu0
      %v1341 = vpop.f32.mrb[0].mxu0
      %1342 = vdwg.mxu0
      %v1344 = vsel %vm1083, %v1158, 0
      %v1346 = vsel %vm1165, %v567, 0
      %1348 = vmatprep.subr.bf16.mxu0 0
      %1349 = vmatpush1.bf16.msra.mxu0 %v1346
      %1350 = vmatprep.subr.bf16.mxu0 0
      %1351 = vmatpush1.bf16.msra.mxu0 0
      %1352 = vmatprep.subr.bf16.mxu0 0
      %1353 = vmatpush1.bf16.msra.mxu0 0
      %1354 = vmatprep.subr.bf16.mxu0 0
      %1355 = vmatpush1.bf16.msra.mxu0 0
      %1356 = vmatprep.subr.bf16.mxu0 0
      %1357 = vmatpush1.bf16.msra.mxu0 0
      %1358 = vmatprep.subr.bf16.mxu0 0
      %1359 = vmatpush1.bf16.msra.mxu0 0
      %1360 = vmatprep.subr.bf16.mxu0 0
      %1361 = vmatpush1.bf16.msra.mxu0 0
      %1362 = vmatprep.subr.bf16.mxu0 0
      %1363 = vmatpush1.bf16.msra.mxu0 0
      %1364 = vmatprep.subr.bf16.mxu0 0
      %1365 = vmatpush1.bf16.msra.mxu0 0
      %1366 = vmatprep.subr.bf16.mxu0 0
      %1367 = vmatpush1.bf16.msra.mxu0 0
      %1368 = vmatprep.subr.bf16.mxu0 0
      %1369 = vmatpush1.bf16.msra.mxu0 0
      %1370 = vmatprep.subr.bf16.mxu0 0
      %1371 = vmatpush1.bf16.msra.mxu0 0
      %1372 = vmatprep.subr.bf16.mxu0 0
      %1373 = vmatpush1.bf16.msra.mxu0 0
      %1374 = vmatprep.subr.bf16.mxu0 0
      %1375 = vmatpush1.bf16.msra.mxu0 0
      %1376 = vmatprep.subr.bf16.mxu0 0
      %1377 = vmatpush1.bf16.msra.mxu0 0
      %1378 = vmatprep.subr.bf16.mxu0 0
      %1379 = vmatpush1.bf16.msra.mxu0 0
      %1380 = vmatprep.mubr.bf16.mxu0 0
      %1381 = vmatmul.mubr.bf16.gmra.mrb[0].mxu0 %v1344
      %v1382 = vpop.f32.mrb[0].mxu0
      %v1383 = vadd.f32 0.0, %v1382
      %v1384 = vpop.f32.mrb[0].mxu0
      %v1385 = vpop.f32.mrb[0].mxu0
      %v1386 = vpop.f32.mrb[0].mxu0
      %1387 = vdwg.mxu0
      %v1389 = vsel %vm1083, %v1159, 0
      %v1391 = vsel %vm1165, %v568, 0
      %1393 = vmatprep.subr.bf16.mxu0 0
      %1394 = vmatpush1.bf16.msra.mxu0 %v1391
      %1395 = vmatprep.subr.bf16.mxu0 0
      %1396 = vmatpush1.bf16.msra.mxu0 0
      %1397 = vmatprep.subr.bf16.mxu0 0
      %1398 = vmatpush1.bf16.msra.mxu0 0
      %1399 = vmatprep.subr.bf16.mxu0 0
      %1400 = vmatpush1.bf16.msra.mxu0 0
      %1401 = vmatprep.subr.bf16.mxu0 0
      %1402 = vmatpush1.bf16.msra.mxu0 0
      %1403 = vmatprep.subr.bf16.mxu0 0
      %1404 = vmatpush1.bf16.msra.mxu0 0
      %1405 = vmatprep.subr.bf16.mxu0 0
      %1406 = vmatpush1.bf16.msra.mxu0 0
      %1407 = vmatprep.subr.bf16.mxu0 0
      %1408 = vmatpush1.bf16.msra.mxu0 0
      %1409 = vmatprep.subr.bf16.mxu0 0
      %1410 = vmatpush1.bf16.msra.mxu0 0
      %1411 = vmatprep.subr.bf16.mxu0 0
      %1412 = vmatpush1.bf16.msra.mxu0 0
      %1413 = vmatprep.subr.bf16.mxu0 0
      %1414 = vmatpush1.bf16.msra.mxu0 0
      %1415 = vmatprep.subr.bf16.mxu0 0
      %1416 = vmatpush1.bf16.msra.mxu0 0
      %1417 = vmatprep.subr.bf16.mxu0 0
      %1418 = vmatpush1.bf16.msra.mxu0 0
      %1419 = vmatprep.subr.bf16.mxu0 0
      %1420 = vmatpush1.bf16.msra.mxu0 0
      %1421 = vmatprep.subr.bf16.mxu0 0
      %1422 = vmatpush1.bf16.msra.mxu0 0
      %1423 = vmatprep.subr.bf16.mxu0 0
      %1424 = vmatpush1.bf16.msra.mxu0 0
      %1425 = vmatprep.mubr.bf16.mxu0 0
      %1426 = vmatmul.mubr.bf16.gmra.mrb[0].mxu0 %v1389
      %v1427 = vpop.f32.mrb[0].mxu0
      %v1428 = vadd.f32 0.0, %v1427
      %v1429 = vpop.f32.mrb[0].mxu0
      %v1430 = vpop.f32.mrb[0].mxu0
      %v1431 = vpop.f32.mrb[0].mxu0
      %1432 = vdwg.mxu0
      %v1434 = vsel %vm1083, %v1160, 0
      %v1436 = vsel %vm1165, %v569, 0
      %1438 = vmatprep.subr.bf16.mxu0 0
      %1439 = vmatpush1.bf16.msra.mxu0 %v1436
      %1440 = vmatprep.subr.bf16.mxu0 0
      %1441 = vmatpush1.bf16.msra.mxu0 0
      %1442 = vmatprep.subr.bf16.mxu0 0
      %1443 = vmatpush1.bf16.msra.mxu0 0
      %1444 = vmatprep.subr.bf16.mxu0 0
      %1445 = vmatpush1.bf16.msra.mxu0 0
      %1446 = vmatprep.subr.bf16.mxu0 0
      %1447 = vmatpush1.bf16.msra.mxu0 0
      %1448 = vmatprep.subr.bf16.mxu0 0
      %1449 = vmatpush1.bf16.msra.mxu0 0
      %1450 = vmatprep.subr.bf16.mxu0 0
      %1451 = vmatpush1.bf16.msra.mxu0 0
      %1452 = vmatprep.subr.bf16.mxu0 0
      %1453 = vmatpush1.bf16.msra.mxu0 0
      %1454 = vmatprep.subr.bf16.mxu0 0
      %1455 = vmatpush1.bf16.msra.mxu0 0
      %1456 = vmatprep.subr.bf16.mxu0 0
      %1457 = vmatpush1.bf16.msra.mxu0 0
      %1458 = vmatprep.subr.bf16.mxu0 0
      %1459 = vmatpush1.bf16.msra.mxu0 0
      %1460 = vmatprep.subr.bf16.mxu0 0
      %1461 = vmatpush1.bf16.msra.mxu0 0
      %1462 = vmatprep.subr.bf16.mxu0 0
      %1463 = vmatpush1.bf16.msra.mxu0 0
      %1464 = vmatprep.subr.bf16.mxu0 0
      %1465 = vmatpush1.bf16.msra.mxu0 0
      %1466 = vmatprep.subr.bf16.mxu0 0
      %1467 = vmatpush1.bf16.msra.mxu0 0
      %1468 = vmatprep.subr.bf16.mxu0 0
      %1469 = vmatpush1.bf16.msra.mxu0 0
      %1470 = vmatprep.mubr.bf16.mxu0 0
      %1471 = vmatmul.mubr.bf16.gmra.mrb[0].mxu0 %v1434
      %v1472 = vpop.f32.mrb[0].mxu0
      %v1473 = vadd.f32 0.0, %v1472
      %v1474 = vpop.f32.mrb[0].mxu0
      %v1475 = vpop.f32.mrb[0].mxu0
      %v1476 = vpop.f32.mrb[0].mxu0
      %1477 = vdwg.mxu0
      %v1479 = vsel %vm1083, %v1161, 0
      %v1481 = vsel %vm1165, %v570, 0
      %1483 = vmatprep.subr.bf16.mxu0 0
      %1484 = vmatpush1.bf16.msra.mxu0 %v1481
      %1485 = vmatprep.subr.bf16.mxu0 0
      %1486 = vmatpush1.bf16.msra.mxu0 0
      %1487 = vmatprep.subr.bf16.mxu0 0
      %1488 = vmatpush1.bf16.msra.mxu0 0
      %1489 = vmatprep.subr.bf16.mxu0 0
      %1490 = vmatpush1.bf16.msra.mxu0 0
      %1491 = vmatprep.subr.bf16.mxu0 0
      %1492 = vmatpush1.bf16.msra.mxu0 0
      %1493 = vmatprep.subr.bf16.mxu0 0
      %1494 = vmatpush1.bf16.msra.mxu0 0
      %1495 = vmatprep.subr.bf16.mxu0 0
      %1496 = vmatpush1.bf16.msra.mxu0 0
      %1497 = vmatprep.subr.bf16.mxu0 0
      %1498 = vmatpush1.bf16.msra.mxu0 0
      %1499 = vmatprep.subr.bf16.mxu0 0
      %1500 = vmatpush1.bf16.msra.mxu0 0
      %1501 = vmatprep.subr.bf16.mxu0 0
      %1502 = vmatpush1.bf16.msra.mxu0 0
      %1503 = vmatprep.subr.bf16.mxu0 0
      %1504 = vmatpush1.bf16.msra.mxu0 0
      %1505 = vmatprep.subr.bf16.mxu0 0
      %1506 = vmatpush1.bf16.msra.mxu0 0
      %1507 = vmatprep.subr.bf16.mxu0 0
      %1508 = vmatpush1.bf16.msra.mxu0 0
      %1509 = vmatprep.subr.bf16.mxu0 0
      %1510 = vmatpush1.bf16.msra.mxu0 0
      %1511 = vmatprep.subr.bf16.mxu0 0
      %1512 = vmatpush1.bf16.msra.mxu0 0
      %1513 = vmatprep.subr.bf16.mxu0 0
      %1514 = vmatpush1.bf16.msra.mxu0 0
      %1515 = vmatprep.mubr.bf16.mxu0 0
      %1516 = vmatmul.mubr.bf16.gmra.mrb[0].mxu0 %v1479
      %v1517 = vpop.f32.mrb[0].mxu0
      %v1518 = vadd.f32 0.0, %v1517
      %v1519 = vpop.f32.mrb[0].mxu0
      %v1520 = vpop.f32.mrb[0].mxu0
      %v1521 = vpop.f32.mrb[0].mxu0
      %1522 = vdwg.mxu0
      %v1524 = vrot.slane %v1153, 1
      %v1525 = vrot.slane %v1153, 2
      %v1526 = vrot.slane %v1153, 3
      %v1527 = vrot.slane %v1153, 4
      %v1528 = vrot.slane %v1153, 5
      %v1529 = vrot.slane %v1153, 6
      %v1530 = vrot.slane %v1153, 7
      %v1539 = vmul.f32 %v1203, %v1153
      %v1540 = vmul.f32 %v1248, %v1524
      %v1541 = vmul.f32 %v1293, %v1525
      %v1542 = vmul.f32 %v1338, %v1526
      %v1543 = vmul.f32 %v1383, %v1527
      %v1544 = vmul.f32 %v1428, %v1528
      %v1545 = vmul.f32 %v1473, %v1529
      %v1546 = vmul.f32 %v1518, %v1530
      %v1547 = vld [vmem:[#allocation15] sm:$0xf]
      %v1548 = vld [vmem:[#allocation15 + $0x4] sm:$0xf]
      %v1549 = vld [vmem:[#allocation15 + $0x8] sm:$0xf]
      %v1550 = vld [vmem:[#allocation15 + $0xc] sm:$0xf]
      %v1551 = vpack.c.bf16 %v1539, %v1539
      %v1552 = vpack.c.bf16 %v1540, %v1540
      %v1553 = vpack.c.bf16 %v1541, %v1541
      %v1554 = vpack.c.bf16 %v1542, %v1542
      %v1555 = vpack.c.bf16 %v1543, %v1543
      %v1556 = vpack.c.bf16 %v1544, %v1544
      %v1557 = vpack.c.bf16 %v1545, %v1545
      %v1558 = vpack.c.bf16 %v1546, %v1546
      %v1559 = vld [vmem:[#allocation17] sm:$0xf]
      %v1560 = vld [vmem:[#allocation17 + $0x4] sm:$0xf]
      %v1561 = vld [vmem:[#allocation17 + $0x8] sm:$0xf]
      %v1562 = vld [vmem:[#allocation17 + $0xc] sm:$0xf]
      %v1571 = vunpack.c.l.b16 %v1551
      %v1572 = vunpack.c.l.b16 %v1552
      %v1573 = vunpack.c.l.b16 %v1553
      %v1574 = vunpack.c.l.b16 %v1554
      %v1575 = vunpack.c.l.b16 %v1555
      %v1576 = vunpack.c.l.b16 %v1556
      %v1577 = vunpack.c.l.b16 %v1557
      %v1578 = vunpack.c.l.b16 %v1558
      %v1579 = vrot.slane %v1572, 7
      %v1580 = vsel %vm1062, %v1579, %v1571
      %v1581 = vrot.slane %v1573, 6
      %v1582 = vsel %vm1065, %v1581, %v1580
      %v1583 = vrot.slane %v1574, 5
      %v1584 = vsel %vm1068, %v1583, %v1582
      %v1585 = vrot.slane %v1575, 4
      %v1586 = vsel %vm1071, %v1585, %v1584
      %v1587 = vrot.slane %v1576, 3
      %v1588 = vsel %vm1074, %v1587, %v1586
      %v1589 = vrot.slane %v1577, 2
      %v1590 = vsel %vm1077, %v1589, %v1588
      %v1591 = vrot.slane %v1578, 1
      %v1592 = vsel %vm1080, %v1591, %v1590
      %v1593 = vpack.c.b16 %v1592, %v1592
      %v1598 = vunpack.c.l.b16 %v1559
      %v1599 = vunpack.c.l.b16 %v1560
      %v1600 = vunpack.c.l.b16 %v1561
      %v1601 = vunpack.c.l.b16 %v1562
      %v1602 = vpack.c.b16 %v1599, %v1598
      %v1603 = vpack.c.b16 %v1601, %v1600
      %v1607 = vsel %vm241, %v1593, 0
      %1609 = vmatprep.subr.bf16.mxu0 0
      %1610 = vmatpush1.bf16.msra.mxu0 %v1602
      %1611 = vmatprep.subr.bf16.mxu0 0
      %1612 = vmatpush1.bf16.msra.mxu0 %v1603
      %1613 = vmatprep.subr.bf16.mxu0 0
      %1614 = vmatpush1.bf16.msra.mxu0 0
      %1615 = vmatprep.subr.bf16.mxu0 0
      %1616 = vmatpush1.bf16.msra.mxu0 0
      %1617 = vmatprep.subr.bf16.mxu0 0
      %1618 = vmatpush1.bf16.msra.mxu0 0
      %1619 = vmatprep.subr.bf16.mxu0 0
      %1620 = vmatpush1.bf16.msra.mxu0 0
      %1621 = vmatprep.subr.bf16.mxu0 0
      %1622 = vmatpush1.bf16.msra.mxu0 0
      %1623 = vmatprep.subr.bf16.mxu0 0
      %1624 = vmatpush1.bf16.msra.mxu0 0
      %1625 = vmatprep.subr.bf16.mxu0 0
      %1626 = vmatpush1.bf16.msra.mxu0 0
      %1627 = vmatprep.subr.bf16.mxu0 0
      %1628 = vmatpush1.bf16.msra.mxu0 0
      %1629 = vmatprep.subr.bf16.mxu0 0
      %1630 = vmatpush1.bf16.msra.mxu0 0
      %1631 = vmatprep.subr.bf16.mxu0 0
      %1632 = vmatpush1.bf16.msra.mxu0 0
      %1633 = vmatprep.subr.bf16.mxu0 0
      %1634 = vmatpush1.bf16.msra.mxu0 0
      %1635 = vmatprep.subr.bf16.mxu0 0
      %1636 = vmatpush1.bf16.msra.mxu0 0
      %1637 = vmatprep.subr.bf16.mxu0 0
      %1638 = vmatpush1.bf16.msra.mxu0 0
      %1639 = vmatprep.subr.bf16.mxu0 0
      %1640 = vmatpush1.bf16.msra.mxu0 0
      %1641 = vmatprep.mubr.bf16.mxu0 0
      %1642 = vmatmul.mubr.bf16.gmra.mrb[0].mxu0 %v1607
      %v1643 = vpop.f32.mrb[0].mxu0
      %v1644 = vadd.f32 0.0, %v1643
      %v1645 = vpop.f32.mrb[0].mxu0
      %v1646 = vpop.f32.mrb[0].mxu0
      %v1647 = vpop.f32.mrb[0].mxu0
      %1648 = vdwg.mxu0
      %1649 = vrot.lane.b32.xlu0 %v562, 96
      %v1650 = vpop.permute.xlu0 %1649
      %v1655 = vunpack.c.l.b16 %v1547
      %v1656 = vunpack.c.l.b16 %v1548
      %v1657 = vunpack.c.l.b16 %v1549
      %v1658 = vunpack.c.l.b16 %v1550
      %v1659 = vpack.c.b16 %v1656, %v1655
      %v1660 = vpack.c.b16 %v1658, %v1657
      %v1664 = vsel %vm241, %v1650, 0
      %1666 = vmatprep.subr.bf16.mxu0 0
      %1667 = vmatpush1.bf16.msra.mxu0 %v1659
      %1668 = vmatprep.subr.bf16.mxu0 0
      %1669 = vmatpush1.bf16.msra.mxu0 %v1660
      %1670 = vmatprep.subr.bf16.mxu0 0
      %1671 = vmatpush1.bf16.msra.mxu0 0
      %1672 = vmatprep.subr.bf16.mxu0 0
      %1673 = vmatpush1.bf16.msra.mxu0 0
      %1674 = vmatprep.subr.bf16.mxu0 0
      %1675 = vmatpush1.bf16.msra.mxu0 0
      %1676 = vmatprep.subr.bf16.mxu0 0
      %1677 = vmatpush1.bf16.msra.mxu0 0
      %1678 = vmatprep.subr.bf16.mxu0 0
      %1679 = vmatpush1.bf16.msra.mxu0 0
      %1680 = vmatprep.subr.bf16.mxu0 0
      %1681 = vmatpush1.bf16.msra.mxu0 0
      %1682 = vmatprep.subr.bf16.mxu0 0
      %1683 = vmatpush1.bf16.msra.mxu0 0
      %1684 = vmatprep.subr.bf16.mxu0 0
      %1685 = vmatpush1.bf16.msra.mxu0 0
      %1686 = vmatprep.subr.bf16.mxu0 0
      %1687 = vmatpush1.bf16.msra.mxu0 0
      %1688 = vmatprep.subr.bf16.mxu0 0
      %1689 = vmatpush1.bf16.msra.mxu0 0
      %1690 = vmatprep.subr.bf16.mxu0 0
      %1691 = vmatpush1.bf16.msra.mxu0 0
      %1692 = vmatprep.subr.bf16.mxu0 0
      %1693 = vmatpush1.bf16.msra.mxu0 0
      %1694 = vmatprep.subr.bf16.mxu0 0
      %1695 = vmatpush1.bf16.msra.mxu0 0
      %1696 = vmatprep.subr.bf16.mxu0 0
      %1697 = vmatpush1.bf16.msra.mxu0 0
      %1698 = vmatprep.mubr.bf16.mxu0 0
      %1699 = vmatmul.mubr.bf16.gmra.mrb[0].mxu0 %v1664
      %v1700 = vpop.f32.mrb[0].mxu0
      %v1701 = vadd.f32 %v1644, %v1700
      %v1702 = vpop.f32.mrb[0].mxu0
      %v1703 = vpop.f32.mrb[0].mxu0
      %v1704 = vpop.f32.mrb[0].mxu0
      %1705 = vdwg.mxu0
      %v1706 = vld [vmem:[#allocation18] sm:$0x1]
      %v1708 = vlaneseq
      %v1709 = vshrl.u32 %v1708, 7
      %v1710 = vsub.s32 0, %v1709
      %v1711 = vrot.slane %v1706, %v1710
      %v1713 = vadd.f32 %v1701, %v1711
      %v1714 = vtanh.pop %v1713
      %v1715 = vpack.c.bf16 %v1714, %v1714
      %vm1716 = vcmask 257024
      %1717 = vst.msk [vmem:[#allocation2] sm:$0xf] %vm1716, %v1715
    $region121: #{tpu_custom_call.1} parent=1 // pred_fallthru
      _
    %v1718 = vld [vmem:[#allocation2] sm:$0xf]
    %v1719 = vld [vmem:[#allocation20] sm:$0xf]
    %v1720 = vld [vmem:[#allocation20 + $0x4] sm:$0xf]
    %v1721 = vld [vmem:[#allocation20 + $0x8] sm:$0xf]
    %v1722 = vld [vmem:[#allocation20 + $0xc] sm:$0xf]
    %v1723 = vld [vmem:[#allocation21] sm:$0x1]
    %v1725 = vlaneseq
    %v1726 = vshrl.u32 %v1725, 7
    %v1727 = vsub.s32 0, %v1726
    %v1728 = vrot.slane %v1723, %v1727
    %v1734 = vunpack.c.l.b16 %v1719
    %v1735 = vunpack.c.l.b16 %v1720
    %v1736 = vunpack.c.l.b16 %v1721
    %v1737 = vunpack.c.l.b16 %v1722
    %v1738 = vpack.c.b16 %v1735, %v1734
    %v1739 = vpack.c.b16 %v1737, %v1736
    %vm1742 = vcmask 261120
    %v1744 = vsel %vm1742, %v1718, 0
    %1746 = vmatprep.subr.bf16.mxu0 0
    %1747 = vmatpush1.bf16.msra.mxu0 %v1738
    %1748 = vmatprep.subr.bf16.mxu0 0
    %1749 = vmatpush1.bf16.msra.mxu0 %v1739
    %1750 = vmatprep.subr.bf16.mxu0 0
    %1751 = vmatpush1.bf16.msra.mxu0 0
    %1752 = vmatprep.subr.bf16.mxu0 0
    %1753 = vmatpush1.bf16.msra.mxu0 0
    %1754 = vmatprep.subr.bf16.mxu0 0
    %1755 = vmatpush1.bf16.msra.mxu0 0
    %1756 = vmatprep.subr.bf16.mxu0 0
    %1757 = vmatpush1.bf16.msra.mxu0 0
    %1758 = vmatprep.subr.bf16.mxu0 0
    %1759 = vmatpush1.bf16.msra.mxu0 0
    %1760 = vmatprep.subr.bf16.mxu0 0
    %1761 = vmatpush1.bf16.msra.mxu0 0
    %1762 = vmatprep.subr.bf16.mxu0 0
    %1763 = vmatpush1.bf16.msra.mxu0 0
    %1764 = vmatprep.subr.bf16.mxu0 0
    %1765 = vmatpush1.bf16.msra.mxu0 0
    %1766 = vmatprep.subr.bf16.mxu0 0
    %1767 = vmatpush1.bf16.msra.mxu0 0
    %1768 = vmatprep.subr.bf16.mxu0 0
    %1769 = vmatpush1.bf16.msra.mxu0 0
    %1770 = vmatprep.subr.bf16.mxu0 0
    %1771 = vmatpush1.bf16.msra.mxu0 0
    %1772 = vmatprep.subr.bf16.mxu0 0
    %1773 = vmatpush1.bf16.msra.mxu0 0
    %1774 = vmatprep.subr.bf16.mxu0 0
    %1775 = vmatpush1.bf16.msra.mxu0 0
    %1776 = vmatprep.subr.bf16.mxu0 0
    %1777 = vmatpush1.bf16.msra.mxu0 0
    %1778 = vmatprep.mubr.bf16.mxu0 0
    %1779 = vmatmul.mubr.bf16.gmra.mrb[0].mxu0 %v1744
    %v1780 = vpop.f32.mrb[0].mxu0
    %v1781 = vadd.f32 %v1728, %v1780
    %v1782 = vpop.f32.mrb[0].mxu0
    %v1783 = vpop.f32.mrb[0].mxu0
    %v1784 = vpop.f32.mrb[0].mxu0
    %1785 = vdwg.mxu0
    %1786 = vst [vmem:[#allocation23] sm:$0xff] %v1781
    // Predicated region
    $region122: #{tpu_custom_call.1} parent=1 // pred_check
      _
    $region123: #{tpu_custom_call.1} parent=1 // pred_check_branch
      %1788 = sbr.rel (0) target = $region125
    $region124: #{tpu_custom_call.1} parent=1 // pred_region
      %s1790 = ssub.s32 128, 128
      %1791 = vsyncadd [#allocation5], %s1790
      %s1793 = sshll.u32 [#allocation23], 4
      %s1794 = int_to_ptr.vmem [resolvable:$true] %s1793
      %1796 = dma.vmem_to_hbm [thread:$0]  %s1794, 128, %s17, [#allocation5]
    $region125: #{tpu_custom_call.1} parent=1 // pred_fallthru
      _
    // Predicated region
    $region126: #{tpu_custom_call.1} parent=1 // pred_check
      _
    $region127: #{tpu_custom_call.1} parent=1 // pred_check_branch
      %1798 = sbr.rel (0) target = $region129
    $region128: #{tpu_custom_call.1} parent=1 // pred_region
      %s1800 = ssub.s32 256, 256
      %1801 = vsyncadd [#allocation25], %s1800
      %s1802 = sshll.u32 [#allocation24], 4
      %s1803 = int_to_ptr.vmem [resolvable:$true] %s1802
      %1808 = dma.vmem_to_hbm [thread:$0]  %s1803, 256, %s18, [#allocation25], 128, 128, 8
    $region129: #{tpu_custom_call.1} parent=1 // pred_fallthru
      _
    // Predicated region
    $region130: #{tpu_custom_call.1} parent=1 // pred_check
      _
    $region131: #{tpu_custom_call.1} parent=1 // pred_check_branch
      %1810 = sbr.rel (0) target = $region133
    $region132: #{tpu_custom_call.1} parent=1 // pred_region
      %1811 = dma.done [#allocation5], 128
    $region133: #{tpu_custom_call.1} parent=1 // pred_fallthru
      _
    // Predicated region
    $region134: #{tpu_custom_call.1} parent=1 // pred_check
      _
    $region135: #{tpu_custom_call.1} parent=1 // pred_check_branch
      %1813 = sbr.rel (0) target = $region137
    $region136: #{tpu_custom_call.1} parent=1 // pred_region
      %1814 = dma.done [#allocation25], 256
    $region137: #{tpu_custom_call.1} parent=1 // pred_fallthru
      _
    %1815 = vsyncpa [#allocation4], 1
    %1816 = vsyncpa [#allocation7], 1
    %1817 = vsyncpa [#allocation10], 1
    %1818 = vsyncpa [#allocation13], 1
    %1819 = vsyncpa [#allocation16], 1
    %1820 = vsyncpa [#allocation19], 1
    %1821 = vsyncpa [#allocation22], 1
    %1822 = vsyncpa [#allocation5], 1
    %1823 = vsyncpa [#allocation25], 1

</llo_original>
